<compile_context>
chip_gen: v7x
topology: tpu7x:2x2x1
jax: 0.10.0
libtpu: 0.0.40
codegen_flags: <defaults>
</compile_context>

<pallas_src>
import functools

import jax
import jax.numpy as jnp
from jax.experimental import pallas as pl
from jax.experimental.pallas import tpu as pltpu


def _lstm_fc_kernel(x_ref, w_ih0_ref, w_hh0_ref, b0_ref,
                    w_ih_ref, w_hh_ref, b_ref,
                    fc_w_ref, fc_b_ref,
                    out_ref,
                    xproj_ref,
                    *, B, T):
    """5-layer LSTM + final Linear, wavefront-scheduled over (layer, time).

    x_ref      : (T*B, D)      time-major flattened input sequence
    w_ih0_ref  : (D, 4H)       layer-0 input->gates weight
    w_hh0_ref  : (H, 4H)       layer-0 hidden->gates weight
    b0_ref     : (1, 4H)       layer-0 combined bias (b_ih + b_hh)
    w_ih_ref   : (L-1, H, 4H)  layers 1..L-1 input->gates weights
    w_hh_ref   : (L-1, H, 4H)  layers 1..L-1 hidden->gates weights
    b_ref      : (L-1, 1, 4H)  layers 1..L-1 combined biases
    fc_w_ref   : (1, H)        final linear weight
    fc_b_ref   : (1, 1)        final linear bias
    out_ref    : (B, 1)        output
    xproj_ref  : (T, B, 4H)    VMEM scratch: hoisted layer-0 input gates
    """
    H = w_hh0_ref.shape[0]
    L = w_ih_ref.shape[0] + 1

    # ---- hoisted layer-0 input projection: one MXU-friendly GEMM with
    # M = T*B rows, bias folded in.  Removes x_t @ W_ih from the hot loop.
    xproj_ref[...] = (
        jnp.dot(x_ref[...], w_ih0_ref[...], preferred_element_type=jnp.float32)
        + b0_ref[...]
    ).reshape(T, B, 4 * H)

    def cell_math(gates, h_prev, c_prev):
        # gates is (B, 4H) = one f32 vreg: 2 full-vreg EUP ops, then slice.
        sig = jax.nn.sigmoid(gates)
        th = jnp.tanh(gates)
        i = sig[:, 0 * H:1 * H]
        f = sig[:, 1 * H:2 * H]
        o = sig[:, 3 * H:4 * H]
        g = th[:, 2 * H:3 * H]
        c_new = f * c_prev + i * g
        h_new = o * jnp.tanh(c_new)
        return h_new, c_new

    # ---- wavefront over (layer, time).  At step s, layer l processes
    # timestep t = s - l (if in range), reading h_{l-1} and h_l from the
    # previous step's state.  Inactive layers keep their state via a select.
    def wavefront_step(s, carry):
        hs, cs = carry                     # tuples of L arrays, each (B, H)
        t0 = jnp.minimum(s, T - 1)         # clamp so the load never goes OOB
        xg0 = xproj_ref[t0]                # layer-0 precomputed gates (B, 4H)
        new_h, new_c = [], []
        for l in range(L):
            if l == 0:
                gates = xg0 + jnp.dot(hs[0], w_hh0_ref[...],
                                      preferred_element_type=jnp.float32)
            else:
                gates = (jnp.dot(hs[l - 1], w_ih_ref[l - 1],
                                 preferred_element_type=jnp.float32)
                         + jnp.dot(hs[l], w_hh_ref[l - 1],
                                   preferred_element_type=jnp.float32)
                         + b_ref[l - 1])
            h_cand, c_cand = cell_math(gates, hs[l], cs[l])
            t = s - l
            active = jnp.logical_and(t >= 0, t < T)
            new_h.append(jnp.where(active, h_cand, hs[l]))
            new_c.append(jnp.where(active, c_cand, cs[l]))
        return tuple(new_h), tuple(new_c)

    zeros = tuple(jnp.zeros((B, H), jnp.float32) for _ in range(L))
    hs, _ = jax.lax.fori_loop(0, T + L - 1, wavefront_step, (zeros, zeros))

    # ---- out = fc(h_top): VPU/XLU reduction instead of an N=1 MXU matmul.
    h_top = hs[L - 1]
    out_ref[...] = (jnp.sum(h_top * fc_w_ref[...], axis=-1, keepdims=True)
                    + fc_b_ref[...]).astype(out_ref.dtype)


def energy_lstm_forward(x, params):
    B, T, D = x.shape
    H = params["w_hh0"].shape[0]

    # Time-major, flattened (T*B, D): the layer-0 projection becomes a single
    # GEMM and no strided middle-dim slicing of x happens inside the kernel.
    x_tm = jnp.transpose(x, (1, 0, 2)).reshape(T * B, D)

    vmem = pl.BlockSpec(memory_space=pltpu.MemorySpace.VMEM)
    kernel = pl.pallas_call(
        functools.partial(_lstm_fc_kernel, B=B, T=T),
        out_shape=jax.ShapeDtypeStruct((B, 1), jnp.float32),
        in_specs=[vmem] * 9,
        out_specs=vmem,
        scratch_shapes=[
            pltpu.VMEM((T, B, 4 * H), jnp.float32),  # hoisted layer-0 gates
        ],
        compiler_params=pltpu.CompilerParams(vmem_limit_bytes=4 << 20),
    )
    return kernel(x_tm,
                  params["w_ih0"], params["w_hh0"], params["b0"],
                  params["w_ih"], params["w_hh"], params["b"],
                  params["fc_w"], params["fc_b"])


def init_params(key, input_size, hidden_size, num_layers):
    """Deterministic init mimicking PyTorch's U(-1/sqrt(H), 1/sqrt(H))."""
    H = hidden_size
    bound = 1.0 / jnp.sqrt(jnp.float32(H))
    keys = jax.random.split(key, 4 * num_layers + 2)

    def unif(k, shape):
        return jax.random.uniform(k, shape, jnp.float32, -bound, bound)

    ki = iter(keys)
    # layer 0
    w_ih0 = unif(next(ki), (input_size, 4 * H))          # transposed vs torch
    w_hh0 = unif(next(ki), (H, 4 * H))
    b0 = unif(next(ki), (1, 4 * H)) + unif(next(ki), (1, 4 * H))  # b_ih + b_hh
    # layers 1..L-1
    w_ih_list, w_hh_list, b_list = [], [], []
    for _ in range(num_layers - 1):
        w_ih_list.append(unif(next(ki), (H, 4 * H)))
        w_hh_list.append(unif(next(ki), (H, 4 * H)))
        b_list.append(unif(next(ki), (1, 4 * H)) + unif(next(ki), (1, 4 * H)))
    # final linear (stored as (1, H) so the kernel epilogue is a reduction)
    fc_w = unif(next(ki), (1, H))
    fc_b = unif(next(ki), (1, 1))

    return {
        "w_ih0": w_ih0, "w_hh0": w_hh0, "b0": b0,
        "w_ih": jnp.stack(w_ih_list), "w_hh": jnp.stack(w_hh_list),
        "b": jnp.stack(b_list),
        "fc_w": fc_w, "fc_b": fc_b,
    }


def reference_forward(x, params):
    """Pure-JAX reference for correctness checking."""
    B, T, D = x.shape
    H = params["w_hh0"].shape[0]

    def run_layer(seq_in, w_ih, w_hh, b):
        h = jnp.zeros((B, H), jnp.float32)
        c = jnp.zeros((B, H), jnp.float32)
        outs = []
        for t in range(T):
            gates = seq_in[:, t, :] @ w_ih + h @ w_hh + b
            i = jax.nn.sigmoid(gates[:, 0 * H:1 * H])
            f = jax.nn.sigmoid(gates[:, 1 * H:2 * H])
            g = jnp.tanh(gates[:, 2 * H:3 * H])
            o = jax.nn.sigmoid(gates[:, 3 * H:4 * H])
            c = f * c + i * g
            h = o * jnp.tanh(c)
            outs.append(h)
        return jnp.stack(outs, axis=1)

    seq = run_layer(x, params["w_ih0"], params["w_hh0"], params["b0"])
    for l in range(params["w_ih"].shape[0]):
        seq = run_layer(seq, params["w_ih"][l], params["w_hh"][l],
                        params["b"][l])
    return seq[:, -1, :] @ params["fc_w"].T + params["fc_b"]


if __name__ == "__main__":
    B, T, D, H, L = 8, 8, 16, 32, 5

    key = jax.random.PRNGKey(0)
    k_x, k_p = jax.random.split(key)
    x = jax.random.normal(k_x, (B, T, D), jnp.float32)
    params = init_params(k_p, D, H, L)

    out = energy_lstm_forward(x, params)
    out = jax.block_until_ready(out)

    ref = reference_forward(x, params)
    assert out.shape == (B, 1), out.shape
    assert jnp.allclose(out, ref, atol=1e-4, rtol=1e-4), (
        f"max abs err = {jnp.max(jnp.abs(out - ref))}")
    print("KERNEL_OK")
</pallas_src>

<mosaic_0001>
module attributes {stable_mosaic.version = 11 : i64} {
  func.func @_lstm_fc_kernel(%arg0: memref<64x16xf32, #tpu.memory_space<vmem>>, %arg1: memref<16x128xf32, #tpu.memory_space<vmem>>, %arg2: memref<32x128xf32, #tpu.memory_space<vmem>>, %arg3: memref<1x128xf32, #tpu.memory_space<vmem>>, %arg4: memref<4x32x128xf32, #tpu.memory_space<vmem>>, %arg5: memref<4x32x128xf32, #tpu.memory_space<vmem>>, %arg6: memref<4x1x128xf32, #tpu.memory_space<vmem>>, %arg7: memref<1x32xf32, #tpu.memory_space<vmem>>, %arg8: memref<1x1xf32, #tpu.memory_space<vmem>>, %arg9: memref<8x1xf32, #tpu.memory_space<vmem>>, %arg10: memref<8x8x128xf32, #tpu.memory_space<vmem>>) attributes {dimension_semantics = [], scalar_prefetch = 0 : i64, scratch_operands = 1 : i64, tpu.core_type = #tpu.core_type<tc>} {
    %c0 = arith.constant 0 : index
    %c0_0 = arith.constant 0 : index
    %0 = vector.load %arg0[%c0, %c0_0] : memref<64x16xf32, #tpu.memory_space<vmem>>, vector<64x16xf32>
    %c0_1 = arith.constant 0 : index
    %c0_2 = arith.constant 0 : index
    %1 = vector.load %arg1[%c0_1, %c0_2] : memref<16x128xf32, #tpu.memory_space<vmem>>, vector<16x128xf32>
    %cst = arith.constant dense<0.000000e+00> : vector<64x128xf32>
    %2 = tpu.matmul %0, %1, %cst {dimension_numbers = #tpu.dot_dimension_numbers<[1], [0], [0], [1], [0, 0, 1, 1], [], []>} : vector<64x16xf32>, vector<16x128xf32>, vector<64x128xf32> -> vector<64x128xf32>
    %c0_3 = arith.constant 0 : index
    %c0_4 = arith.constant 0 : index
    %3 = vector.load %arg3[%c0_3, %c0_4] : memref<1x128xf32, #tpu.memory_space<vmem>>, vector<1x128xf32>
    %4 = vector.broadcast %3 : vector<1x128xf32> to vector<64x128xf32>
    %5 = arith.addf %2, %4 : vector<64x128xf32>
    %6 = vector.shape_cast %5 : vector<64x128xf32> to vector<8x8x128xf32>
    %c0_5 = arith.constant 0 : index
    %c0_6 = arith.constant 0 : index
    %c0_7 = arith.constant 0 : index
    %7 = vector.load %arg10[%c0_5, %c0_6, %c0_7] : memref<8x8x128xf32, #tpu.memory_space<vmem>>, vector<8x8x128xf32>
    tpu.vector_store %arg10[%c0_5, %c0_6, %c0_7], %6 {strides = array<i32>} : memref<8x8x128xf32, #tpu.memory_space<vmem>>, vector<8x8x128xf32>,
    %cst_8 = arith.constant 0.000000e+00 : f32
    %8 = vector.broadcast %cst_8 : f32 to vector<8x32xf32>
    %cst_9 = arith.constant 0.000000e+00 : f32
    %9 = vector.broadcast %cst_9 : f32 to vector<8x32xf32>
    %cst_10 = arith.constant 0.000000e+00 : f32
    %10 = vector.broadcast %cst_10 : f32 to vector<8x32xf32>
    %cst_11 = arith.constant 0.000000e+00 : f32
    %11 = vector.broadcast %cst_11 : f32 to vector<8x32xf32>
    %cst_12 = arith.constant 0.000000e+00 : f32
    %12 = vector.broadcast %cst_12 : f32 to vector<8x32xf32>
    %c0_i32 = arith.constant 0 : i32
    %c12_i32 = arith.constant 12 : i32
    %13 = arith.addi %c0_i32, %c12_i32 : i32
    %c1_i32 = arith.constant 1 : i32
    %14:10 = scf.for %arg11 = %c0_i32 to %13 step %c1_i32 iter_args(%arg12 = %8, %arg13 = %9, %arg14 = %10, %arg15 = %11, %arg16 = %12, %arg17 = %8, %arg18 = %9, %arg19 = %10, %arg20 = %11, %arg21 = %12) -> (vector<8x32xf32>, vector<8x32xf32>, vector<8x32xf32>, vector<8x32xf32>, vector<8x32xf32>, vector<8x32xf32>, vector<8x32xf32>, vector<8x32xf32>, vector<8x32xf32>, vector<8x32xf32>)  : i32 {
      %c7_i32 = arith.constant 7 : i32
      %24 = arith.minsi %arg11, %c7_i32 : i32
      %25 = arith.index_cast %24 : i32 to index
      %c0_21 = arith.constant 0 : index
      %c0_22 = arith.constant 0 : index
      %26 = vector.load %arg10[%25, %c0_21, %c0_22] : memref<8x8x128xf32, #tpu.memory_space<vmem>>, vector<1x8x128xf32>
      %27 = vector.shape_cast %26 : vector<1x8x128xf32> to vector<8x128xf32>
      %c0_23 = arith.constant 0 : index
      %c0_24 = arith.constant 0 : index
      %28 = vector.load %arg2[%c0_23, %c0_24] : memref<32x128xf32, #tpu.memory_space<vmem>>, vector<32x128xf32>
      %cst_25 = arith.constant dense<0.000000e+00> : vector<8x128xf32>
      %29 = tpu.matmul %arg12, %28, %cst_25 {dimension_numbers = #tpu.dot_dimension_numbers<[1], [0], [0], [1], [0, 0, 1, 1], [], []>} : vector<8x32xf32>, vector<32x128xf32>, vector<8x128xf32> -> vector<8x128xf32>
      %30 = arith.addf %27, %29 : vector<8x128xf32>
      %31 = arith.negf %30 : vector<8x128xf32>
      %32 = math.exp %31 : vector<8x128xf32>
      %cst_26 = arith.constant 1.000000e+00 : f32
      %33 = vector.broadcast %cst_26 : f32 to vector<8x128xf32>
      %34 = arith.addf %33, %32 : vector<8x128xf32>
      %35 = arith.divf %33, %34 : vector<8x128xf32>
      %36 = math.tanh %30 : vector<8x128xf32>
      %37 = vector.extract_strided_slice %35 {offsets = [0, 0], sizes = [8, 32], strides = [1, 1]} : vector<8x128xf32> to vector<8x32xf32>
      %38 = vector.extract_strided_slice %35 {offsets = [0, 32], sizes = [8, 32], strides = [1, 1]} : vector<8x128xf32> to vector<8x32xf32>
      %39 = vector.extract_strided_slice %35 {offsets = [0, 96], sizes = [8, 32], strides = [1, 1]} : vector<8x128xf32> to vector<8x32xf32>
      %40 = vector.extract_strided_slice %36 {offsets = [0, 64], sizes = [8, 32], strides = [1, 1]} : vector<8x128xf32> to vector<8x32xf32>
      %41 = arith.mulf %38, %arg17 : vector<8x32xf32>
      %42 = arith.mulf %37, %40 : vector<8x32xf32>
      %43 = arith.addf %41, %42 : vector<8x32xf32>
      %44 = math.tanh %43 : vector<8x32xf32>
      %45 = arith.mulf %39, %44 : vector<8x32xf32>
      %c0_i32_27 = arith.constant 0 : i32
      %46 = arith.subi %arg11, %c0_i32_27 : i32
      %c0_i32_28 = arith.constant 0 : i32
      %47 = arith.cmpi sge, %46, %c0_i32_28 : i32
      %c8_i32 = arith.constant 8 : i32
      %48 = arith.cmpi slt, %46, %c8_i32 : i32
      %49 = arith.andi %47, %48 : i1
      %50 = arith.select %49, %45, %arg12 : vector<8x32xf32>
      %51 = arith.select %49, %43, %arg17 : vector<8x32xf32>
      %c0_29 = arith.constant 0 : index
      %c0_30 = arith.constant 0 : index
      %c0_31 = arith.constant 0 : index
      %52 = vector.load %arg4[%c0_29, %c0_30, %c0_31] : memref<4x32x128xf32, #tpu.memory_space<vmem>>, vector<1x32x128xf32>
      %53 = vector.shape_cast %52 : vector<1x32x128xf32> to vector<32x128xf32>
      %cst_32 = arith.constant dense<0.000000e+00> : vector<8x128xf32>
      %54 = tpu.matmul %arg12, %53, %cst_32 {dimension_numbers = #tpu.dot_dimension_numbers<[1], [0], [0], [1], [0, 0, 1, 1], [], []>} : vector<8x32xf32>, vector<32x128xf32>, vector<8x128xf32> -> vector<8x128xf32>
      %c0_33 = arith.constant 0 : index
      %c0_34 = arith.constant 0 : index
      %c0_35 = arith.constant 0 : index
      %55 = vector.load %arg5[%c0_33, %c0_34, %c0_35] : memref<4x32x128xf32, #tpu.memory_space<vmem>>, vector<1x32x128xf32>
      %56 = vector.shape_cast %55 : vector<1x32x128xf32> to vector<32x128xf32>
      %cst_36 = arith.constant dense<0.000000e+00> : vector<8x128xf32>
      %57 = tpu.matmul %arg13, %56, %cst_36 {dimension_numbers = #tpu.dot_dimension_numbers<[1], [0], [0], [1], [0, 0, 1, 1], [], []>} : vector<8x32xf32>, vector<32x128xf32>, vector<8x128xf32> -> vector<8x128xf32>
      %58 = arith.addf %54, %57 : vector<8x128xf32>
      %c0_37 = arith.constant 0 : index
      %c0_38 = arith.constant 0 : index
      %c0_39 = arith.constant 0 : index
      %59 = vector.load %arg6[%c0_37, %c0_38, %c0_39] : memref<4x1x128xf32, #tpu.memory_space<vmem>>, vector<1x1x128xf32>
      %60 = vector.shape_cast %59 : vector<1x1x128xf32> to vector<1x128xf32>
      %61 = vector.broadcast %60 : vector<1x128xf32> to vector<8x128xf32>
      %62 = arith.addf %58, %61 : vector<8x128xf32>
      %63 = arith.negf %62 : vector<8x128xf32>
      %64 = math.exp %63 : vector<8x128xf32>
      %cst_40 = arith.constant 1.000000e+00 : f32
      %65 = vector.broadcast %cst_40 : f32 to vector<8x128xf32>
      %66 = arith.addf %65, %64 : vector<8x128xf32>
      %67 = arith.divf %65, %66 : vector<8x128xf32>
      %68 = math.tanh %62 : vector<8x128xf32>
      %69 = vector.extract_strided_slice %67 {offsets = [0, 0], sizes = [8, 32], strides = [1, 1]} : vector<8x128xf32> to vector<8x32xf32>
      %70 = vector.extract_strided_slice %67 {offsets = [0, 32], sizes = [8, 32], strides = [1, 1]} : vector<8x128xf32> to vector<8x32xf32>
      %71 = vector.extract_strided_slice %67 {offsets = [0, 96], sizes = [8, 32], strides = [1, 1]} : vector<8x128xf32> to vector<8x32xf32>
      %72 = vector.extract_strided_slice %68 {offsets = [0, 64], sizes = [8, 32], strides = [1, 1]} : vector<8x128xf32> to vector<8x32xf32>
      %73 = arith.mulf %70, %arg18 : vector<8x32xf32>
      %74 = arith.mulf %69, %72 : vector<8x32xf32>
      %75 = arith.addf %73, %74 : vector<8x32xf32>
      %76 = math.tanh %75 : vector<8x32xf32>
      %77 = arith.mulf %71, %76 : vector<8x32xf32>
      %c1_i32_41 = arith.constant 1 : i32
      %78 = arith.subi %arg11, %c1_i32_41 : i32
      %c0_i32_42 = arith.constant 0 : i32
      %79 = arith.cmpi sge, %78, %c0_i32_42 : i32
      %c8_i32_43 = arith.constant 8 : i32
      %80 = arith.cmpi slt, %78, %c8_i32_43 : i32
      %81 = arith.andi %79, %80 : i1
      %82 = arith.select %81, %77, %arg13 : vector<8x32xf32>
      %83 = arith.select %81, %75, %arg18 : vector<8x32xf32>
      %c1 = arith.constant 1 : index
      %c0_44 = arith.constant 0 : index
      %c0_45 = arith.constant 0 : index
      %84 = vector.load %arg4[%c1, %c0_44, %c0_45] : memref<4x32x128xf32, #tpu.memory_space<vmem>>, vector<1x32x128xf32>
      %85 = vector.shape_cast %84 : vector<1x32x128xf32> to vector<32x128xf32>
      %cst_46 = arith.constant dense<0.000000e+00> : vector<8x128xf32>
      %86 = tpu.matmul %arg13, %85, %cst_46 {dimension_numbers = #tpu.dot_dimension_numbers<[1], [0], [0], [1], [0, 0, 1, 1], [], []>} : vector<8x32xf32>, vector<32x128xf32>, vector<8x128xf32> -> vector<8x128xf32>
      %c1_47 = arith.constant 1 : index
      %c0_48 = arith.constant 0 : index
      %c0_49 = arith.constant 0 : index
      %87 = vector.load %arg5[%c1_47, %c0_48, %c0_49] : memref<4x32x128xf32, #tpu.memory_space<vmem>>, vector<1x32x128xf32>
      %88 = vector.shape_cast %87 : vector<1x32x128xf32> to vector<32x128xf32>
      %cst_50 = arith.constant dense<0.000000e+00> : vector<8x128xf32>
      %89 = tpu.matmul %arg14, %88, %cst_50 {dimension_numbers = #tpu.dot_dimension_numbers<[1], [0], [0], [1], [0, 0, 1, 1], [], []>} : vector<8x32xf32>, vector<32x128xf32>, vector<8x128xf32> -> vector<8x128xf32>
      %90 = arith.addf %86, %89 : vector<8x128xf32>
      %c1_51 = arith.constant 1 : index
      %c0_52 = arith.constant 0 : index
      %c0_53 = arith.constant 0 : index
      %91 = vector.load %arg6[%c1_51, %c0_52, %c0_53] : memref<4x1x128xf32, #tpu.memory_space<vmem>>, vector<1x1x128xf32>
      %92 = vector.shape_cast %91 : vector<1x1x128xf32> to vector<1x128xf32>
      %93 = vector.broadcast %92 : vector<1x128xf32> to vector<8x128xf32>
      %94 = arith.addf %90, %93 : vector<8x128xf32>
      %95 = arith.negf %94 : vector<8x128xf32>
      %96 = math.exp %95 : vector<8x128xf32>
      %cst_54 = arith.constant 1.000000e+00 : f32
      %97 = vector.broadcast %cst_54 : f32 to vector<8x128xf32>
      %98 = arith.addf %97, %96 : vector<8x128xf32>
      %99 = arith.divf %97, %98 : vector<8x128xf32>
      %100 = math.tanh %94 : vector<8x128xf32>
      %101 = vector.extract_strided_slice %99 {offsets = [0, 0], sizes = [8, 32], strides = [1, 1]} : vector<8x128xf32> to vector<8x32xf32>
      %102 = vector.extract_strided_slice %99 {offsets = [0, 32], sizes = [8, 32], strides = [1, 1]} : vector<8x128xf32> to vector<8x32xf32>
      %103 = vector.extract_strided_slice %99 {offsets = [0, 96], sizes = [8, 32], strides = [1, 1]} : vector<8x128xf32> to vector<8x32xf32>
      %104 = vector.extract_strided_slice %100 {offsets = [0, 64], sizes = [8, 32], strides = [1, 1]} : vector<8x128xf32> to vector<8x32xf32>
      %105 = arith.mulf %102, %arg19 : vector<8x32xf32>
      %106 = arith.mulf %101, %104 : vector<8x32xf32>
      %107 = arith.addf %105, %106 : vector<8x32xf32>
      %108 = math.tanh %107 : vector<8x32xf32>
      %109 = arith.mulf %103, %108 : vector<8x32xf32>
      %c2_i32 = arith.constant 2 : i32
      %110 = arith.subi %arg11, %c2_i32 : i32
      %c0_i32_55 = arith.constant 0 : i32
      %111 = arith.cmpi sge, %110, %c0_i32_55 : i32
      %c8_i32_56 = arith.constant 8 : i32
      %112 = arith.cmpi slt, %110, %c8_i32_56 : i32
      %113 = arith.andi %111, %112 : i1
      %114 = arith.select %113, %109, %arg14 : vector<8x32xf32>
      %115 = arith.select %113, %107, %arg19 : vector<8x32xf32>
      %c2 = arith.constant 2 : index
      %c0_57 = arith.constant 0 : index
      %c0_58 = arith.constant 0 : index
      %116 = vector.load %arg4[%c2, %c0_57, %c0_58] : memref<4x32x128xf32, #tpu.memory_space<vmem>>, vector<1x32x128xf32>
      %117 = vector.shape_cast %116 : vector<1x32x128xf32> to vector<32x128xf32>
      %cst_59 = arith.constant dense<0.000000e+00> : vector<8x128xf32>
      %118 = tpu.matmul %arg14, %117, %cst_59 {dimension_numbers = #tpu.dot_dimension_numbers<[1], [0], [0], [1], [0, 0, 1, 1], [], []>} : vector<8x32xf32>, vector<32x128xf32>, vector<8x128xf32> -> vector<8x128xf32>
      %c2_60 = arith.constant 2 : index
      %c0_61 = arith.constant 0 : index
      %c0_62 = arith.constant 0 : index
      %119 = vector.load %arg5[%c2_60, %c0_61, %c0_62] : memref<4x32x128xf32, #tpu.memory_space<vmem>>, vector<1x32x128xf32>
      %120 = vector.shape_cast %119 : vector<1x32x128xf32> to vector<32x128xf32>
      %cst_63 = arith.constant dense<0.000000e+00> : vector<8x128xf32>
      %121 = tpu.matmul %arg15, %120, %cst_63 {dimension_numbers = #tpu.dot_dimension_numbers<[1], [0], [0], [1], [0, 0, 1, 1], [], []>} : vector<8x32xf32>, vector<32x128xf32>, vector<8x128xf32> -> vector<8x128xf32>
      %122 = arith.addf %118, %121 : vector<8x128xf32>
      %c2_64 = arith.constant 2 : index
      %c0_65 = arith.constant 0 : index
      %c0_66 = arith.constant 0 : index
      %123 = vector.load %arg6[%c2_64, %c0_65, %c0_66] : memref<4x1x128xf32, #tpu.memory_space<vmem>>, vector<1x1x128xf32>
      %124 = vector.shape_cast %123 : vector<1x1x128xf32> to vector<1x128xf32>
      %125 = vector.broadcast %124 : vector<1x128xf32> to vector<8x128xf32>
      %126 = arith.addf %122, %125 : vector<8x128xf32>
      %127 = arith.negf %126 : vector<8x128xf32>
      %128 = math.exp %127 : vector<8x128xf32>
      %cst_67 = arith.constant 1.000000e+00 : f32
      %129 = vector.broadcast %cst_67 : f32 to vector<8x128xf32>
      %130 = arith.addf %129, %128 : vector<8x128xf32>
      %131 = arith.divf %129, %130 : vector<8x128xf32>
      %132 = math.tanh %126 : vector<8x128xf32>
      %133 = vector.extract_strided_slice %131 {offsets = [0, 0], sizes = [8, 32], strides = [1, 1]} : vector<8x128xf32> to vector<8x32xf32>
      %134 = vector.extract_strided_slice %131 {offsets = [0, 32], sizes = [8, 32], strides = [1, 1]} : vector<8x128xf32> to vector<8x32xf32>
      %135 = vector.extract_strided_slice %131 {offsets = [0, 96], sizes = [8, 32], strides = [1, 1]} : vector<8x128xf32> to vector<8x32xf32>
      %136 = vector.extract_strided_slice %132 {offsets = [0, 64], sizes = [8, 32], strides = [1, 1]} : vector<8x128xf32> to vector<8x32xf32>
      %137 = arith.mulf %134, %arg20 : vector<8x32xf32>
      %138 = arith.mulf %133, %136 : vector<8x32xf32>
      %139 = arith.addf %137, %138 : vector<8x32xf32>
      %140 = math.tanh %139 : vector<8x32xf32>
      %141 = arith.mulf %135, %140 : vector<8x32xf32>
      %c3_i32 = arith.constant 3 : i32
      %142 = arith.subi %arg11, %c3_i32 : i32
      %c0_i32_68 = arith.constant 0 : i32
      %143 = arith.cmpi sge, %142, %c0_i32_68 : i32
      %c8_i32_69 = arith.constant 8 : i32
      %144 = arith.cmpi slt, %142, %c8_i32_69 : i32
      %145 = arith.andi %143, %144 : i1
      %146 = arith.select %145, %141, %arg15 : vector<8x32xf32>
      %147 = arith.select %145, %139, %arg20 : vector<8x32xf32>
      %c3 = arith.constant 3 : index
      %c0_70 = arith.constant 0 : index
      %c0_71 = arith.constant 0 : index
      %148 = vector.load %arg4[%c3, %c0_70, %c0_71] : memref<4x32x128xf32, #tpu.memory_space<vmem>>, vector<1x32x128xf32>
      %149 = vector.shape_cast %148 : vector<1x32x128xf32> to vector<32x128xf32>
      %cst_72 = arith.constant dense<0.000000e+00> : vector<8x128xf32>
      %150 = tpu.matmul %arg15, %149, %cst_72 {dimension_numbers = #tpu.dot_dimension_numbers<[1], [0], [0], [1], [0, 0, 1, 1], [], []>} : vector<8x32xf32>, vector<32x128xf32>, vector<8x128xf32> -> vector<8x128xf32>
      %c3_73 = arith.constant 3 : index
      %c0_74 = arith.constant 0 : index
      %c0_75 = arith.constant 0 : index
      %151 = vector.load %arg5[%c3_73, %c0_74, %c0_75] : memref<4x32x128xf32, #tpu.memory_space<vmem>>, vector<1x32x128xf32>
      %152 = vector.shape_cast %151 : vector<1x32x128xf32> to vector<32x128xf32>
      %cst_76 = arith.constant dense<0.000000e+00> : vector<8x128xf32>
      %153 = tpu.matmul %arg16, %152, %cst_76 {dimension_numbers = #tpu.dot_dimension_numbers<[1], [0], [0], [1], [0, 0, 1, 1], [], []>} : vector<8x32xf32>, vector<32x128xf32>, vector<8x128xf32> -> vector<8x128xf32>
      %154 = arith.addf %150, %153 : vector<8x128xf32>
      %c3_77 = arith.constant 3 : index
      %c0_78 = arith.constant 0 : index
      %c0_79 = arith.constant 0 : index
      %155 = vector.load %arg6[%c3_77, %c0_78, %c0_79] : memref<4x1x128xf32, #tpu.memory_space<vmem>>, vector<1x1x128xf32>
      %156 = vector.shape_cast %155 : vector<1x1x128xf32> to vector<1x128xf32>
      %157 = vector.broadcast %156 : vector<1x128xf32> to vector<8x128xf32>
      %158 = arith.addf %154, %157 : vector<8x128xf32>
      %159 = arith.negf %158 : vector<8x128xf32>
      %160 = math.exp %159 : vector<8x128xf32>
      %cst_80 = arith.constant 1.000000e+00 : f32
      %161 = vector.broadcast %cst_80 : f32 to vector<8x128xf32>
      %162 = arith.addf %161, %160 : vector<8x128xf32>
      %163 = arith.divf %161, %162 : vector<8x128xf32>
      %164 = math.tanh %158 : vector<8x128xf32>
      %165 = vector.extract_strided_slice %163 {offsets = [0, 0], sizes = [8, 32], strides = [1, 1]} : vector<8x128xf32> to vector<8x32xf32>
      %166 = vector.extract_strided_slice %163 {offsets = [0, 32], sizes = [8, 32], strides = [1, 1]} : vector<8x128xf32> to vector<8x32xf32>
      %167 = vector.extract_strided_slice %163 {offsets = [0, 96], sizes = [8, 32], strides = [1, 1]} : vector<8x128xf32> to vector<8x32xf32>
      %168 = vector.extract_strided_slice %164 {offsets = [0, 64], sizes = [8, 32], strides = [1, 1]} : vector<8x128xf32> to vector<8x32xf32>
      %169 = arith.mulf %166, %arg21 : vector<8x32xf32>
      %170 = arith.mulf %165, %168 : vector<8x32xf32>
      %171 = arith.addf %169, %170 : vector<8x32xf32>
      %172 = math.tanh %171 : vector<8x32xf32>
      %173 = arith.mulf %167, %172 : vector<8x32xf32>
      %c4_i32 = arith.constant 4 : i32
      %174 = arith.subi %arg11, %c4_i32 : i32
      %c0_i32_81 = arith.constant 0 : i32
      %175 = arith.cmpi sge, %174, %c0_i32_81 : i32
      %c8_i32_82 = arith.constant 8 : i32
      %176 = arith.cmpi slt, %174, %c8_i32_82 : i32
      %177 = arith.andi %175, %176 : i1
      %178 = arith.select %177, %173, %arg16 : vector<8x32xf32>
      %179 = arith.select %177, %171, %arg21 : vector<8x32xf32>
      scf.yield %50, %82, %114, %146, %178, %51, %83, %115, %147, %179 : vector<8x32xf32>, vector<8x32xf32>, vector<8x32xf32>, vector<8x32xf32>, vector<8x32xf32>, vector<8x32xf32>, vector<8x32xf32>, vector<8x32xf32>, vector<8x32xf32>, vector<8x32xf32>
    }
    %c12_i32_13 = arith.constant 12 : i32
    %c0_14 = arith.constant 0 : index
    %c0_15 = arith.constant 0 : index
    %15 = vector.load %arg7[%c0_14, %c0_15] : memref<1x32xf32, #tpu.memory_space<vmem>>, vector<1x32xf32>
    %16 = vector.broadcast %15 : vector<1x32xf32> to vector<8x32xf32>
    %17 = arith.mulf %14#4, %16 : vector<8x32xf32>
    %cst_16 = arith.constant dense<0.000000e+00> : vector<8xf32>
    %18 = vector.multi_reduction <add>, %17, %cst_16 [1] : vector<8x32xf32> to vector<8xf32>
    %19 = vector.shape_cast %18 : vector<8xf32> to vector<8x1xf32>
    %c0_17 = arith.constant 0 : index
    %c0_18 = arith.constant 0 : index
    %20 = vector.load %arg8[%c0_17, %c0_18] : memref<1x1xf32, #tpu.memory_space<vmem>>, vector<1x1xf32>
    %21 = vector.broadcast %20 : vector<1x1xf32> to vector<8x1xf32>
    %22 = arith.addf %19, %21 : vector<8x1xf32>
    %c0_19 = arith.constant 0 : index
    %c0_20 = arith.constant 0 : index
    %23 = vector.load %arg9[%c0_19, %c0_20] : memref<8x1xf32, #tpu.memory_space<vmem>>, vector<8x1xf32>
    tpu.vector_store %arg9[%c0_19, %c0_20], %22 {strides = array<i32>} : memref<8x1xf32, #tpu.memory_space<vmem>>, vector<8x1xf32>,
    return
  }
}

</mosaic_0001>

<llo_original>
// kernel: tpu_custom_call.1
$region0: #{tpu_custom_call.1}
  #allocation0 [shape = 'u32[]', space=smem, size = 0x4, offset = 0x4, fixed_abs, tag = 'smem constant byte address 0x4 - core index']
  #allocation1 [shape = 'u32[144,128]{1,0:T(1,128)}', space=vmem, size = 0x12000, scoped, tag = 'internal scratch']
  #allocation2 [shape = 'f32[8,8,128]{2,1,0:T(8,128)}', space=vmem, size = 0x8000, scoped, tag = 'scratch operand']
  #allocation3 [shape = 'f32[1,1]{1,0:T(1,128)S(1)}', space=vmem, size = 0x200, scoped, tag = 'scoped memory for tpu_custom_call.1']
  %s0 = inlined_call_operand.vmem [shape: f32[64,16], index: 0, kind: input, shape index: {}]
  %s1 = inlined_call_operand.vmem [shape: f32[16,128], index: 1, kind: input, shape index: {}]
  %s2 = inlined_call_operand.vmem [shape: f32[32,128], index: 2, kind: input, shape index: {}]
  %s3 = inlined_call_operand.vmem [shape: f32[1,128], index: 3, kind: input, shape index: {}]
  %s4 = inlined_call_operand.hbm [shape: f32[4,32,128], index: 4, kind: input, shape index: {}]
  %s5 = inlined_call_operand.hbm [shape: f32[4,32,128], index: 5, kind: input, shape index: {}]
  %s6 = inlined_call_operand.vmem [shape: f32[4,1,128], index: 6, kind: input, shape index: {}]
  %s7 = inlined_call_operand.vmem [shape: f32[1,32], index: 7, kind: input, shape index: {}]
  %s8 = inlined_call_operand.<no memory space> [shape: f32[1,1], index: 8, kind: input, shape index: {}]
  %s9 = inlined_call_operand.vmem [shape: f32[8,1], index: 9, kind: output, shape index: {}]
  %s10 = sld [smem:[#allocation0]]
  $region61: #{tpu_custom_call.1} parent=0
    _
  %s12 = ssub.s32 1, %s10
  %s13 = scalar_select 0, %s12, %s10
  %v14 = vstv %s8
  %15 = vst [vmem:[#allocation3] sm:$0x1] %v14
  $region1: #{tpu_custom_call.1} parent=0
    #allocation4 [shape = 'u8[65536]{0}', space=vmem, size = 0x10000, scoped, tag = 'input window, operand 4, single buffered']
    #allocation5 [shape = 's32[1]{0}', space=sflag, size = 0x4, scoped, tag = 'scoped memory for tpu_custom_call.1']
    #allocation6 [shape = 'u8[65536]{0}', space=vmem, size = 0x10000, scoped, tag = 'input window, operand 5, single buffered']
    #allocation7 [shape = 's32[1]{0}', space=sflag, size = 0x4, scoped, tag = 'scoped memory for tpu_custom_call.1']
    %16 = vsyncpa [#allocation5], 0
    %17 = vsyncpa [#allocation7], 0
    // Predicated region
    $region2: #{tpu_custom_call.1} parent=1 // pred_check
      _
    $region3: #{tpu_custom_call.1} parent=1 // pred_check_branch
      %19 = sbr.rel (0) target = $region5
    $region4: #{tpu_custom_call.1} parent=1 // pred_region
      _
    $region5: #{tpu_custom_call.1} parent=1 // pred_fallthru
      _
    // Predicated region
    $region6: #{tpu_custom_call.1} parent=1 // pred_check
      _
    $region7: #{tpu_custom_call.1} parent=1 // pred_check_branch
      %21 = sbr.rel (0) target = $region9
    $region8: #{tpu_custom_call.1} parent=1 // pred_region
      _
    $region9: #{tpu_custom_call.1} parent=1 // pred_fallthru
      _
    // Predicated region
    $region10: #{tpu_custom_call.1} parent=1 // pred_check
      _
    $region11: #{tpu_custom_call.1} parent=1 // pred_check_branch
      %23 = sbr.rel (0) target = $region13
    $region12: #{tpu_custom_call.1} parent=1 // pred_region
      _
    $region13: #{tpu_custom_call.1} parent=1 // pred_fallthru
      _
    // Predicated region
    $region14: #{tpu_custom_call.1} parent=1 // pred_check
      _
    $region15: #{tpu_custom_call.1} parent=1 // pred_check_branch
      %25 = sbr.rel (0) target = $region17
    $region16: #{tpu_custom_call.1} parent=1 // pred_region
      _
    $region17: #{tpu_custom_call.1} parent=1 // pred_fallthru
      _
    // Predicated region
    $region18: #{tpu_custom_call.1} parent=1 // pred_check
      _
    $region19: #{tpu_custom_call.1} parent=1 // pred_check_branch
      %27 = sbr.rel (0) target = $region21
    $region20: #{tpu_custom_call.1} parent=1 // pred_region
      %s29 = ssub.s32 2048, 2048
      %30 = vsyncadd [#allocation5], %s29
      %s31 = sshll.u32 [#allocation4], 4
      %s32 = int_to_ptr.vmem [resolvable:$true] %s31
      %37 = dma.hbm_to_vmem [thread:$0]  %s4, 2048, %s32, [#allocation5], 128, 128, 8
    $region21: #{tpu_custom_call.1} parent=1 // pred_fallthru
      _
    // Predicated region
    $region22: #{tpu_custom_call.1} parent=1 // pred_check
      _
    $region23: #{tpu_custom_call.1} parent=1 // pred_check_branch
      %39 = sbr.rel (0) target = $region25
    $region24: #{tpu_custom_call.1} parent=1 // pred_region
      %s41 = ssub.s32 2048, 2048
      %42 = vsyncadd [#allocation7], %s41
      %s43 = sshll.u32 [#allocation6], 4
      %s44 = int_to_ptr.vmem [resolvable:$true] %s43
      %49 = dma.hbm_to_vmem [thread:$0]  %s5, 2048, %s44, [#allocation7], 128, 128, 8
    $region25: #{tpu_custom_call.1} parent=1 // pred_fallthru
      _
    // Predicated region
    $region26: #{tpu_custom_call.1} parent=1 // pred_check
      _
    $region27: #{tpu_custom_call.1} parent=1 // pred_check_branch
      %51 = sbr.rel (0) target = $region29
    $region28: #{tpu_custom_call.1} parent=1 // pred_region
      _
    $region29: #{tpu_custom_call.1} parent=1 // pred_fallthru
      _
    // Predicated region
    $region30: #{tpu_custom_call.1} parent=1 // pred_check
      _
    $region31: #{tpu_custom_call.1} parent=1 // pred_check_branch
      %53 = sbr.rel (0) target = $region33
    $region32: #{tpu_custom_call.1} parent=1 // pred_region
      _
    $region33: #{tpu_custom_call.1} parent=1 // pred_fallthru
      _
    // Predicated region
    $region34: #{tpu_custom_call.1} parent=1 // pred_check
      _
    $region35: #{tpu_custom_call.1} parent=1 // pred_check_branch
      %55 = sbr.rel (0) target = $region37
    $region36: #{tpu_custom_call.1} parent=1 // pred_region
      _
    $region37: #{tpu_custom_call.1} parent=1 // pred_fallthru
      _
    // Predicated region
    $region38: #{tpu_custom_call.1} parent=1 // pred_check
      _
    $region39: #{tpu_custom_call.1} parent=1 // pred_check_branch
      %57 = sbr.rel (0) target = $region41
    $region40: #{tpu_custom_call.1} parent=1 // pred_region
      %58 = dma.done [#allocation5], 2048
    $region41: #{tpu_custom_call.1} parent=1 // pred_fallthru
      _
    // Predicated region
    $region42: #{tpu_custom_call.1} parent=1 // pred_check
      _
    $region43: #{tpu_custom_call.1} parent=1 // pred_check_branch
      %60 = sbr.rel (0) target = $region45
    $region44: #{tpu_custom_call.1} parent=1 // pred_region
      %61 = dma.done [#allocation7], 2048
    $region45: #{tpu_custom_call.1} parent=1 // pred_fallthru
      _
    %v62 = vld [vmem:[%s0] sm:$0xff]
    %v63 = vld [vmem:[%s0 + $0x8] sm:$0xff]
    %v64 = vld [vmem:[%s0 + $0x10] sm:$0xff]
    %v65 = vld [vmem:[%s0 + $0x18] sm:$0xff]
    %v66 = vld [vmem:[%s0 + $0x20] sm:$0xff]
    %v67 = vld [vmem:[%s0 + $0x28] sm:$0xff]
    %v68 = vld [vmem:[%s0 + $0x30] sm:$0xff]
    %v69 = vld [vmem:[%s0 + $0x38] sm:$0xff]
    %v70 = vld [vmem:[%s1] sm:$0xff]
    %v71 = vld [vmem:[%s1 + $0x8] sm:$0xff]
    %v72 = vld [vmem:[%s3] sm:$0x1]
    %v74 = vlaneseq
    %v75 = vshrl.u32 %v74, 7
    %v76 = vsub.s32 0, %v75
    %v77 = vrot.slane %v72, %v76
    %vm79 = vcmask 130048
    %v81 = vsel %vm79, %v62, 0
    %v84 = vsel %vm79, %v63, 0
    %v87 = vsel %vm79, %v64, 0
    %v90 = vsel %vm79, %v65, 0
    %v93 = vsel %vm79, %v66, 0
    %v96 = vsel %vm79, %v67, 0
    %v99 = vsel %vm79, %v68, 0
    %v102 = vsel %vm79, %v69, 0
    %104 = vmatprep.subr.mxu0 0.0
    %105 = vmatpush1.msra.mxu0 %v70
    %106 = vmatprep.subr.mxu0 0.0
    %107 = vmatpush1.msra.mxu0 %v71
    %108 = vmatprep.subr.mxu0 0.0
    %109 = vmatpush1.msra.mxu0 0.0
    %110 = vmatprep.subr.mxu0 0.0
    %111 = vmatpush1.msra.mxu0 0.0
    %112 = vmatprep.subr.mxu0 0.0
    %113 = vmatpush1.msra.mxu0 0.0
    %114 = vmatprep.subr.mxu0 0.0
    %115 = vmatpush1.msra.mxu0 0.0
    %116 = vmatprep.subr.mxu0 0.0
    %117 = vmatpush1.msra.mxu0 0.0
    %118 = vmatprep.subr.mxu0 0.0
    %119 = vmatpush1.msra.mxu0 0.0
    %120 = vmatprep.subr.mxu0 0.0
    %121 = vmatpush1.msra.mxu0 0.0
    %122 = vmatprep.subr.mxu0 0.0
    %123 = vmatpush1.msra.mxu0 0.0
    %124 = vmatprep.subr.mxu0 0.0
    %125 = vmatpush1.msra.mxu0 0.0
    %126 = vmatprep.subr.mxu0 0.0
    %127 = vmatpush1.msra.mxu0 0.0
    %128 = vmatprep.subr.mxu0 0.0
    %129 = vmatpush1.msra.mxu0 0.0
    %130 = vmatprep.subr.mxu0 0.0
    %131 = vmatpush1.msra.mxu0 0.0
    %132 = vmatprep.subr.mxu0 0.0
    %133 = vmatpush1.msra.mxu0 0.0
    %134 = vmatprep.subr.mxu0 0.0
    %135 = vmatpush1.msra.mxu0 0.0
    %136 = vmatprep.subr.mxu0 0.0
    %137 = vmatpush1.msra.mxu0 0.0
    %138 = vmatprep.subr.mxu0 0.0
    %139 = vmatpush1.msra.mxu0 0.0
    %140 = vmatprep.subr.mxu0 0.0
    %141 = vmatpush1.msra.mxu0 0.0
    %142 = vmatprep.subr.mxu0 0.0
    %143 = vmatpush1.msra.mxu0 0.0
    %144 = vmatprep.subr.mxu0 0.0
    %145 = vmatpush1.msra.mxu0 0.0
    %146 = vmatprep.subr.mxu0 0.0
    %147 = vmatpush1.msra.mxu0 0.0
    %148 = vmatprep.subr.mxu0 0.0
    %149 = vmatpush1.msra.mxu0 0.0
    %150 = vmatprep.subr.mxu0 0.0
    %151 = vmatpush1.msra.mxu0 0.0
    %152 = vmatprep.subr.mxu0 0.0
    %153 = vmatpush1.msra.mxu0 0.0
    %154 = vmatprep.subr.mxu0 0.0
    %155 = vmatpush1.msra.mxu0 0.0
    %156 = vmatprep.subr.mxu0 0.0
    %157 = vmatpush1.msra.mxu0 0.0
    %158 = vmatprep.subr.mxu0 0.0
    %159 = vmatpush1.msra.mxu0 0.0
    %160 = vmatprep.subr.mxu0 0.0
    %161 = vmatpush1.msra.mxu0 0.0
    %162 = vmatprep.subr.mxu0 0.0
    %163 = vmatpush1.msra.mxu0 0.0
    %164 = vmatprep.subr.mxu0 0.0
    %165 = vmatpush1.msra.mxu0 0.0
    %166 = vmatprep.subr.mxu0 0.0
    %167 = vmatpush1.msra.mxu0 0.0
    %168 = vmatprep.mubr.f32.mxu0 0.0
    %169 = vmatmul.mubr.f32.gmra.mrb[0].mxu0 %v81
    %v170 = vpop.f32.mrb[0].mxu0
    %v171 = vadd.f32 %v77, %v170
    %v172 = vpop.f32.mrb[0].mxu0
    %173 = vmatprep.mubr.f32.mxu0 0.0
    %174 = vmatmul.mubr.f32.gmra.mrb[0].mxu0 %v84
    %v175 = vpop.f32.mrb[0].mxu0
    %v176 = vadd.f32 %v77, %v175
    %v177 = vpop.f32.mrb[0].mxu0
    %178 = vmatprep.mubr.f32.mxu0 0.0
    %179 = vmatmul.mubr.f32.gmra.mrb[0].mxu0 %v87
    %v180 = vpop.f32.mrb[0].mxu0
    %v181 = vadd.f32 %v77, %v180
    %v182 = vpop.f32.mrb[0].mxu0
    %183 = vmatprep.mubr.f32.mxu0 0.0
    %184 = vmatmul.mubr.f32.gmra.mrb[0].mxu0 %v90
    %v185 = vpop.f32.mrb[0].mxu0
    %v186 = vadd.f32 %v77, %v185
    %v187 = vpop.f32.mrb[0].mxu0
    %188 = vmatprep.mubr.f32.mxu0 0.0
    %189 = vmatmul.mubr.f32.gmra.mrb[0].mxu0 %v93
    %v190 = vpop.f32.mrb[0].mxu0
    %v191 = vadd.f32 %v77, %v190
    %v192 = vpop.f32.mrb[0].mxu0
    %193 = vmatprep.mubr.f32.mxu0 0.0
    %194 = vmatmul.mubr.f32.gmra.mrb[0].mxu0 %v96
    %v195 = vpop.f32.mrb[0].mxu0
    %v196 = vadd.f32 %v77, %v195
    %v197 = vpop.f32.mrb[0].mxu0
    %198 = vmatprep.mubr.f32.mxu0 0.0
    %199 = vmatmul.mubr.f32.gmra.mrb[0].mxu0 %v99
    %v200 = vpop.f32.mrb[0].mxu0
    %v201 = vadd.f32 %v77, %v200
    %v202 = vpop.f32.mrb[0].mxu0
    %203 = vmatprep.mubr.f32.mxu0 0.0
    %204 = vmatmul.mubr.f32.gmra.mrb[0].mxu0 %v102
    %v205 = vpop.f32.mrb[0].mxu0
    %v206 = vadd.f32 %v77, %v205
    %v207 = vpop.f32.mrb[0].mxu0
    %208 = vdwg.mxu0
    %209 = vst [vmem:[#allocation2] sm:$0xff] %v171
    %210 = vst [vmem:[#allocation2 + $0x8] sm:$0xff] %v176
    %211 = vst [vmem:[#allocation2 + $0x10] sm:$0xff] %v181
    %212 = vst [vmem:[#allocation2 + $0x18] sm:$0xff] %v186
    %213 = vst [vmem:[#allocation2 + $0x20] sm:$0xff] %v191
    %214 = vst [vmem:[#allocation2 + $0x28] sm:$0xff] %v196
    %215 = vst [vmem:[#allocation2 + $0x30] sm:$0xff] %v201
    %216 = vst [vmem:[#allocation2 + $0x38] sm:$0xff] %v206
    loop: start=0, step=1, limit=12
    $region46: #{tpu_custom_call.1} parent=1 // loop_pre_header
      _
    $region47: #{tpu_custom_call.1} parent=1 // loop_header
      %s218 = sphi 0, %s222
      %p219 = scmp.ge.s32.totalorder %s218, 12
      %v223 = vphi 0.0, %v350
      %v224 = vphi 0.0, %v545
      %v225 = vphi 0.0, %v743
      %v226 = vphi 0.0, %v941
      %v227 = vphi 0.0, %v1139
      %v228 = vphi 0.0, %v351
      %v229 = vphi 0.0, %v546
      %v230 = vphi 0.0, %v744
      %v231 = vphi 0.0, %v942
      %v232 = vphi 0.0, %v1140
    $region48: #{tpu_custom_call.1} parent=1 // loop_header_branch
      %221 = sbr.rel (%p219) target = $region52
    $region49: #{tpu_custom_call.1} parent=1 // loop_body
      %p233 = scmp.lt.s32.totalorder %s218, 7
      %s234 = scalar_select %p233, %s218, 7
      %s235 = smul.u32 %s234, 8
      %s236 = scalar_lea.vmem [#allocation2], %s235
      %v237 = vld [vmem:[%s236] sm:$0xff]
      %v238 = vld [vmem:[%s2] sm:$0xff]
      %v239 = vld [vmem:[%s2 + $0x8] sm:$0xff]
      %v240 = vld [vmem:[%s2 + $0x10] sm:$0xff]
      %v241 = vld [vmem:[%s2 + $0x18] sm:$0xff]
      %243 = vrot.lane.b32.xlu0 %v223, 32
      %v244 = vpop.permute.xlu0 %243
      %vm245 = vcmask 261120
      %v246 = vsel %vm245, %v244, 0
      %248 = vmatprep.subr.mxu0 0.0
      %249 = vmatpush1.msra.mxu0 %v238
      %250 = vmatprep.subr.mxu0 0.0
      %251 = vmatpush1.msra.mxu0 %v239
      %252 = vmatprep.subr.mxu0 0.0
      %253 = vmatpush1.msra.mxu0 %v240
      %254 = vmatprep.subr.mxu0 0.0
      %255 = vmatpush1.msra.mxu0 %v241
      %256 = vmatprep.subr.mxu0 0.0
      %257 = vmatpush1.msra.mxu0 0.0
      %258 = vmatprep.subr.mxu0 0.0
      %259 = vmatpush1.msra.mxu0 0.0
      %260 = vmatprep.subr.mxu0 0.0
      %261 = vmatpush1.msra.mxu0 0.0
      %262 = vmatprep.subr.mxu0 0.0
      %263 = vmatpush1.msra.mxu0 0.0
      %264 = vmatprep.subr.mxu0 0.0
      %265 = vmatpush1.msra.mxu0 0.0
      %266 = vmatprep.subr.mxu0 0.0
      %267 = vmatpush1.msra.mxu0 0.0
      %268 = vmatprep.subr.mxu0 0.0
      %269 = vmatpush1.msra.mxu0 0.0
      %270 = vmatprep.subr.mxu0 0.0
      %271 = vmatpush1.msra.mxu0 0.0
      %272 = vmatprep.subr.mxu0 0.0
      %273 = vmatpush1.msra.mxu0 0.0
      %274 = vmatprep.subr.mxu0 0.0
      %275 = vmatpush1.msra.mxu0 0.0
      %276 = vmatprep.subr.mxu0 0.0
      %277 = vmatpush1.msra.mxu0 0.0
      %278 = vmatprep.subr.mxu0 0.0
      %279 = vmatpush1.msra.mxu0 0.0
      %280 = vmatprep.subr.mxu0 0.0
      %281 = vmatpush1.msra.mxu0 0.0
      %282 = vmatprep.subr.mxu0 0.0
      %283 = vmatpush1.msra.mxu0 0.0
      %284 = vmatprep.subr.mxu0 0.0
      %285 = vmatpush1.msra.mxu0 0.0
      %286 = vmatprep.subr.mxu0 0.0
      %287 = vmatpush1.msra.mxu0 0.0
      %288 = vmatprep.subr.mxu0 0.0
      %289 = vmatpush1.msra.mxu0 0.0
      %290 = vmatprep.subr.mxu0 0.0
      %291 = vmatpush1.msra.mxu0 0.0
      %292 = vmatprep.subr.mxu0 0.0
      %293 = vmatpush1.msra.mxu0 0.0
      %294 = vmatprep.subr.mxu0 0.0
      %295 = vmatpush1.msra.mxu0 0.0
      %296 = vmatprep.subr.mxu0 0.0
      %297 = vmatpush1.msra.mxu0 0.0
      %298 = vmatprep.subr.mxu0 0.0
      %299 = vmatpush1.msra.mxu0 0.0
      %300 = vmatprep.subr.mxu0 0.0
      %301 = vmatpush1.msra.mxu0 0.0
      %302 = vmatprep.subr.mxu0 0.0
      %303 = vmatpush1.msra.mxu0 0.0
      %304 = vmatprep.subr.mxu0 0.0
      %305 = vmatpush1.msra.mxu0 0.0
      %306 = vmatprep.subr.mxu0 0.0
      %307 = vmatpush1.msra.mxu0 0.0
      %308 = vmatprep.subr.mxu0 0.0
      %309 = vmatpush1.msra.mxu0 0.0
      %310 = vmatprep.subr.mxu0 0.0
      %311 = vmatpush1.msra.mxu0 0.0
      %312 = vmatprep.mubr.f32.mxu0 0.0
      %313 = vmatmul.mubr.f32.gmra.mrb[0].mxu0 %v246
      %v314 = vpop.f32.mrb[0].mxu0
      %v315 = vadd.f32 0.0, %v314
      %v316 = vpop.f32.mrb[0].mxu0
      %317 = vdwg.mxu0
      %v318 = vadd.f32 %v237, %v315
      %v319 = vxor.u32 %v318, 2147483648
      %v320 = vmul.f32 %v319, 1.442695
      %v321 = vpow.pop %v320
      %v322 = vadd.f32 %v321, 1.0
      %v323 = vrcp.pop %v322
      %v324 = vmul.f32 1.0, %v323
      %v325 = vtanh.pop %v318
      %v326 = vmul.f32 %v324, %v228
      %328 = vrot.lane.b32.xlu0 %v325, 64
      %v329 = vpop.permute.xlu0 %328
      %v331 = vmul.f32 %v324, %v329
      %333 = vrot.lane.b32.xlu0 %v331, 32
      %v334 = vpop.permute.xlu0 %333
      %v336 = vadd.f32 %v326, %v334
      %v337 = vtanh.pop %v336
      %339 = vrot.lane.b32.xlu0 %v337, 64
      %v340 = vpop.permute.xlu0 %339
      %v342 = vmul.f32 %v324, %v340
      %p343 = scmp.ge.s32.totalorder %s218, 0
      %p344 = scmp.lt.s32.totalorder %s218, 8
      %p345 = pnand %p343, %p344
      %p346 = pneg %p345
      %s347 = scalar_select %p346, 1, 0
      %v348 = vstv %s347
      %vm349 = vcmp.eq.s32.totalorder %v348, 1
      %v350 = vsel %vm349, %v342, %v223
      %v351 = vsel %vm349, %v336, %v228
      %v352 = vld [vmem:[#allocation4] sm:$0xff]
      %v353 = vld [vmem:[#allocation4 + $0x8] sm:$0xff]
      %v354 = vld [vmem:[#allocation4 + $0x10] sm:$0xff]
      %v355 = vld [vmem:[#allocation4 + $0x18] sm:$0xff]
      %v356 = vld [vmem:[#allocation6] sm:$0xff]
      %v357 = vld [vmem:[#allocation6 + $0x8] sm:$0xff]
      %v358 = vld [vmem:[#allocation6 + $0x10] sm:$0xff]
      %v359 = vld [vmem:[#allocation6 + $0x18] sm:$0xff]
      %361 = vrot.lane.b32.xlu0 %v224, 32
      %v362 = vpop.permute.xlu0 %361
      %v363 = vsel %vm245, %v362, 0
      %365 = vmatprep.subr.mxu0 0.0
      %366 = vmatpush1.msra.mxu0 %v356
      %367 = vmatprep.subr.mxu0 0.0
      %368 = vmatpush1.msra.mxu0 %v357
      %369 = vmatprep.subr.mxu0 0.0
      %370 = vmatpush1.msra.mxu0 %v358
      %371 = vmatprep.subr.mxu0 0.0
      %372 = vmatpush1.msra.mxu0 %v359
      %373 = vmatprep.subr.mxu0 0.0
      %374 = vmatpush1.msra.mxu0 0.0
      %375 = vmatprep.subr.mxu0 0.0
      %376 = vmatpush1.msra.mxu0 0.0
      %377 = vmatprep.subr.mxu0 0.0
      %378 = vmatpush1.msra.mxu0 0.0
      %379 = vmatprep.subr.mxu0 0.0
      %380 = vmatpush1.msra.mxu0 0.0
      %381 = vmatprep.subr.mxu0 0.0
      %382 = vmatpush1.msra.mxu0 0.0
      %383 = vmatprep.subr.mxu0 0.0
      %384 = vmatpush1.msra.mxu0 0.0
      %385 = vmatprep.subr.mxu0 0.0
      %386 = vmatpush1.msra.mxu0 0.0
      %387 = vmatprep.subr.mxu0 0.0
      %388 = vmatpush1.msra.mxu0 0.0
      %389 = vmatprep.subr.mxu0 0.0
      %390 = vmatpush1.msra.mxu0 0.0
      %391 = vmatprep.subr.mxu0 0.0
      %392 = vmatpush1.msra.mxu0 0.0
      %393 = vmatprep.subr.mxu0 0.0
      %394 = vmatpush1.msra.mxu0 0.0
      %395 = vmatprep.subr.mxu0 0.0
      %396 = vmatpush1.msra.mxu0 0.0
      %397 = vmatprep.subr.mxu0 0.0
      %398 = vmatpush1.msra.mxu0 0.0
      %399 = vmatprep.subr.mxu0 0.0
      %400 = vmatpush1.msra.mxu0 0.0
      %401 = vmatprep.subr.mxu0 0.0
      %402 = vmatpush1.msra.mxu0 0.0
      %403 = vmatprep.subr.mxu0 0.0
      %404 = vmatpush1.msra.mxu0 0.0
      %405 = vmatprep.subr.mxu0 0.0
      %406 = vmatpush1.msra.mxu0 0.0
      %407 = vmatprep.subr.mxu0 0.0
      %408 = vmatpush1.msra.mxu0 0.0
      %409 = vmatprep.subr.mxu0 0.0
      %410 = vmatpush1.msra.mxu0 0.0
      %411 = vmatprep.subr.mxu0 0.0
      %412 = vmatpush1.msra.mxu0 0.0
      %413 = vmatprep.subr.mxu0 0.0
      %414 = vmatpush1.msra.mxu0 0.0
      %415 = vmatprep.subr.mxu0 0.0
      %416 = vmatpush1.msra.mxu0 0.0
      %417 = vmatprep.subr.mxu0 0.0
      %418 = vmatpush1.msra.mxu0 0.0
      %419 = vmatprep.subr.mxu0 0.0
      %420 = vmatpush1.msra.mxu0 0.0
      %421 = vmatprep.subr.mxu0 0.0
      %422 = vmatpush1.msra.mxu0 0.0
      %423 = vmatprep.subr.mxu0 0.0
      %424 = vmatpush1.msra.mxu0 0.0
      %425 = vmatprep.subr.mxu0 0.0
      %426 = vmatpush1.msra.mxu0 0.0
      %427 = vmatprep.subr.mxu0 0.0
      %428 = vmatpush1.msra.mxu0 0.0
      %429 = vmatprep.mubr.f32.mxu0 0.0
      %430 = vmatmul.mubr.f32.gmra.mrb[0].mxu0 %v363
      %v431 = vpop.f32.mrb[0].mxu0
      %v432 = vadd.f32 0.0, %v431
      %v433 = vpop.f32.mrb[0].mxu0
      %434 = vdwg.mxu0
      %435 = vmatprep.subr.mxu0 0.0
      %436 = vmatpush1.msra.mxu0 %v352
      %437 = vmatprep.subr.mxu0 0.0
      %438 = vmatpush1.msra.mxu0 %v353
      %439 = vmatprep.subr.mxu0 0.0
      %440 = vmatpush1.msra.mxu0 %v354
      %441 = vmatprep.subr.mxu0 0.0
      %442 = vmatpush1.msra.mxu0 %v355
      %443 = vmatprep.subr.mxu0 0.0
      %444 = vmatpush1.msra.mxu0 0.0
      %445 = vmatprep.subr.mxu0 0.0
      %446 = vmatpush1.msra.mxu0 0.0
      %447 = vmatprep.subr.mxu0 0.0
      %448 = vmatpush1.msra.mxu0 0.0
      %449 = vmatprep.subr.mxu0 0.0
      %450 = vmatpush1.msra.mxu0 0.0
      %451 = vmatprep.subr.mxu0 0.0
      %452 = vmatpush1.msra.mxu0 0.0
      %453 = vmatprep.subr.mxu0 0.0
      %454 = vmatpush1.msra.mxu0 0.0
      %455 = vmatprep.subr.mxu0 0.0
      %456 = vmatpush1.msra.mxu0 0.0
      %457 = vmatprep.subr.mxu0 0.0
      %458 = vmatpush1.msra.mxu0 0.0
      %459 = vmatprep.subr.mxu0 0.0
      %460 = vmatpush1.msra.mxu0 0.0
      %461 = vmatprep.subr.mxu0 0.0
      %462 = vmatpush1.msra.mxu0 0.0
      %463 = vmatprep.subr.mxu0 0.0
      %464 = vmatpush1.msra.mxu0 0.0
      %465 = vmatprep.subr.mxu0 0.0
      %466 = vmatpush1.msra.mxu0 0.0
      %467 = vmatprep.subr.mxu0 0.0
      %468 = vmatpush1.msra.mxu0 0.0
      %469 = vmatprep.subr.mxu0 0.0
      %470 = vmatpush1.msra.mxu0 0.0
      %471 = vmatprep.subr.mxu0 0.0
      %472 = vmatpush1.msra.mxu0 0.0
      %473 = vmatprep.subr.mxu0 0.0
      %474 = vmatpush1.msra.mxu0 0.0
      %475 = vmatprep.subr.mxu0 0.0
      %476 = vmatpush1.msra.mxu0 0.0
      %477 = vmatprep.subr.mxu0 0.0
      %478 = vmatpush1.msra.mxu0 0.0
      %479 = vmatprep.subr.mxu0 0.0
      %480 = vmatpush1.msra.mxu0 0.0
      %481 = vmatprep.subr.mxu0 0.0
      %482 = vmatpush1.msra.mxu0 0.0
      %483 = vmatprep.subr.mxu0 0.0
      %484 = vmatpush1.msra.mxu0 0.0
      %485 = vmatprep.subr.mxu0 0.0
      %486 = vmatpush1.msra.mxu0 0.0
      %487 = vmatprep.subr.mxu0 0.0
      %488 = vmatpush1.msra.mxu0 0.0
      %489 = vmatprep.subr.mxu0 0.0
      %490 = vmatpush1.msra.mxu0 0.0
      %491 = vmatprep.subr.mxu0 0.0
      %492 = vmatpush1.msra.mxu0 0.0
      %493 = vmatprep.subr.mxu0 0.0
      %494 = vmatpush1.msra.mxu0 0.0
      %495 = vmatprep.subr.mxu0 0.0
      %496 = vmatpush1.msra.mxu0 0.0
      %497 = vmatprep.subr.mxu0 0.0
      %498 = vmatpush1.msra.mxu0 0.0
      %499 = vmatprep.mubr.f32.mxu0 0.0
      %500 = vmatmul.mubr.f32.gmra.mrb[0].mxu0 %v246
      %v501 = vpop.f32.mrb[0].mxu0
      %v502 = vadd.f32 %v432, %v501
      %v503 = vpop.f32.mrb[0].mxu0
      %504 = vdwg.mxu0
      %v505 = vld [vmem:[%s6] sm:$0x1]
      %v507 = vlaneseq
      %v508 = vshrl.u32 %v507, 7
      %v509 = vsub.s32 0, %v508
      %v510 = vrot.slane %v505, %v509
      %v512 = vadd.f32 %v502, %v510
      %v513 = vxor.u32 %v512, 2147483648
      %v514 = vmul.f32 %v513, 1.442695
      %v515 = vpow.pop %v514
      %v516 = vadd.f32 %v515, 1.0
      %v517 = vrcp.pop %v516
      %v518 = vmul.f32 1.0, %v517
      %v519 = vtanh.pop %v512
      %v520 = vmul.f32 %v518, %v229
      %522 = vrot.lane.b32.xlu0 %v519, 64
      %v523 = vpop.permute.xlu0 %522
      %v525 = vmul.f32 %v518, %v523
      %527 = vrot.lane.b32.xlu0 %v525, 32
      %v528 = vpop.permute.xlu0 %527
      %v530 = vadd.f32 %v520, %v528
      %v531 = vtanh.pop %v530
      %533 = vrot.lane.b32.xlu0 %v531, 64
      %v534 = vpop.permute.xlu0 %533
      %v536 = vmul.f32 %v518, %v534
      %s537 = ssub.s32 %s218, 1
      %p538 = scmp.ge.s32.totalorder %s537, 0
      %p539 = scmp.lt.s32.totalorder %s537, 8
      %p540 = pnand %p538, %p539
      %p541 = pneg %p540
      %s542 = scalar_select %p541, 1, 0
      %v543 = vstv %s542
      %vm544 = vcmp.eq.s32.totalorder %v543, 1
      %v545 = vsel %vm544, %v536, %v224
      %v546 = vsel %vm544, %v530, %v229
      %s547 = scalar_lea.vmem [#allocation4], 32
      %v548 = vld [vmem:[%s547] sm:$0xff]
      %v549 = vld [vmem:[%s547 + $0x8] sm:$0xff]
      %v550 = vld [vmem:[%s547 + $0x10] sm:$0xff]
      %v551 = vld [vmem:[%s547 + $0x18] sm:$0xff]
      %s552 = scalar_lea.vmem [#allocation6], 32
      %v553 = vld [vmem:[%s552] sm:$0xff]
      %v554 = vld [vmem:[%s552 + $0x8] sm:$0xff]
      %v555 = vld [vmem:[%s552 + $0x10] sm:$0xff]
      %v556 = vld [vmem:[%s552 + $0x18] sm:$0xff]
      %558 = vrot.lane.b32.xlu0 %v225, 32
      %v559 = vpop.permute.xlu0 %558
      %v560 = vsel %vm245, %v559, 0
      %562 = vmatprep.subr.mxu0 0.0
      %563 = vmatpush1.msra.mxu0 %v553
      %564 = vmatprep.subr.mxu0 0.0
      %565 = vmatpush1.msra.mxu0 %v554
      %566 = vmatprep.subr.mxu0 0.0
      %567 = vmatpush1.msra.mxu0 %v555
      %568 = vmatprep.subr.mxu0 0.0
      %569 = vmatpush1.msra.mxu0 %v556
      %570 = vmatprep.subr.mxu0 0.0
      %571 = vmatpush1.msra.mxu0 0.0
      %572 = vmatprep.subr.mxu0 0.0
      %573 = vmatpush1.msra.mxu0 0.0
      %574 = vmatprep.subr.mxu0 0.0
      %575 = vmatpush1.msra.mxu0 0.0
      %576 = vmatprep.subr.mxu0 0.0
      %577 = vmatpush1.msra.mxu0 0.0
      %578 = vmatprep.subr.mxu0 0.0
      %579 = vmatpush1.msra.mxu0 0.0
      %580 = vmatprep.subr.mxu0 0.0
      %581 = vmatpush1.msra.mxu0 0.0
      %582 = vmatprep.subr.mxu0 0.0
      %583 = vmatpush1.msra.mxu0 0.0
      %584 = vmatprep.subr.mxu0 0.0
      %585 = vmatpush1.msra.mxu0 0.0
      %586 = vmatprep.subr.mxu0 0.0
      %587 = vmatpush1.msra.mxu0 0.0
      %588 = vmatprep.subr.mxu0 0.0
      %589 = vmatpush1.msra.mxu0 0.0
      %590 = vmatprep.subr.mxu0 0.0
      %591 = vmatpush1.msra.mxu0 0.0
      %592 = vmatprep.subr.mxu0 0.0
      %593 = vmatpush1.msra.mxu0 0.0
      %594 = vmatprep.subr.mxu0 0.0
      %595 = vmatpush1.msra.mxu0 0.0
      %596 = vmatprep.subr.mxu0 0.0
      %597 = vmatpush1.msra.mxu0 0.0
      %598 = vmatprep.subr.mxu0 0.0
      %599 = vmatpush1.msra.mxu0 0.0
      %600 = vmatprep.subr.mxu0 0.0
      %601 = vmatpush1.msra.mxu0 0.0
      %602 = vmatprep.subr.mxu0 0.0
      %603 = vmatpush1.msra.mxu0 0.0
      %604 = vmatprep.subr.mxu0 0.0
      %605 = vmatpush1.msra.mxu0 0.0
      %606 = vmatprep.subr.mxu0 0.0
      %607 = vmatpush1.msra.mxu0 0.0
      %608 = vmatprep.subr.mxu0 0.0
      %609 = vmatpush1.msra.mxu0 0.0
      %610 = vmatprep.subr.mxu0 0.0
      %611 = vmatpush1.msra.mxu0 0.0
      %612 = vmatprep.subr.mxu0 0.0
      %613 = vmatpush1.msra.mxu0 0.0
      %614 = vmatprep.subr.mxu0 0.0
      %615 = vmatpush1.msra.mxu0 0.0
      %616 = vmatprep.subr.mxu0 0.0
      %617 = vmatpush1.msra.mxu0 0.0
      %618 = vmatprep.subr.mxu0 0.0
      %619 = vmatpush1.msra.mxu0 0.0
      %620 = vmatprep.subr.mxu0 0.0
      %621 = vmatpush1.msra.mxu0 0.0
      %622 = vmatprep.subr.mxu0 0.0
      %623 = vmatpush1.msra.mxu0 0.0
      %624 = vmatprep.subr.mxu0 0.0
      %625 = vmatpush1.msra.mxu0 0.0
      %626 = vmatprep.mubr.f32.mxu0 0.0
      %627 = vmatmul.mubr.f32.gmra.mrb[0].mxu0 %v560
      %v628 = vpop.f32.mrb[0].mxu0
      %v629 = vadd.f32 0.0, %v628
      %v630 = vpop.f32.mrb[0].mxu0
      %631 = vdwg.mxu0
      %632 = vmatprep.subr.mxu0 0.0
      %633 = vmatpush1.msra.mxu0 %v548
      %634 = vmatprep.subr.mxu0 0.0
      %635 = vmatpush1.msra.mxu0 %v549
      %636 = vmatprep.subr.mxu0 0.0
      %637 = vmatpush1.msra.mxu0 %v550
      %638 = vmatprep.subr.mxu0 0.0
      %639 = vmatpush1.msra.mxu0 %v551
      %640 = vmatprep.subr.mxu0 0.0
      %641 = vmatpush1.msra.mxu0 0.0
      %642 = vmatprep.subr.mxu0 0.0
      %643 = vmatpush1.msra.mxu0 0.0
      %644 = vmatprep.subr.mxu0 0.0
      %645 = vmatpush1.msra.mxu0 0.0
      %646 = vmatprep.subr.mxu0 0.0
      %647 = vmatpush1.msra.mxu0 0.0
      %648 = vmatprep.subr.mxu0 0.0
      %649 = vmatpush1.msra.mxu0 0.0
      %650 = vmatprep.subr.mxu0 0.0
      %651 = vmatpush1.msra.mxu0 0.0
      %652 = vmatprep.subr.mxu0 0.0
      %653 = vmatpush1.msra.mxu0 0.0
      %654 = vmatprep.subr.mxu0 0.0
      %655 = vmatpush1.msra.mxu0 0.0
      %656 = vmatprep.subr.mxu0 0.0
      %657 = vmatpush1.msra.mxu0 0.0
      %658 = vmatprep.subr.mxu0 0.0
      %659 = vmatpush1.msra.mxu0 0.0
      %660 = vmatprep.subr.mxu0 0.0
      %661 = vmatpush1.msra.mxu0 0.0
      %662 = vmatprep.subr.mxu0 0.0
      %663 = vmatpush1.msra.mxu0 0.0
      %664 = vmatprep.subr.mxu0 0.0
      %665 = vmatpush1.msra.mxu0 0.0
      %666 = vmatprep.subr.mxu0 0.0
      %667 = vmatpush1.msra.mxu0 0.0
      %668 = vmatprep.subr.mxu0 0.0
      %669 = vmatpush1.msra.mxu0 0.0
      %670 = vmatprep.subr.mxu0 0.0
      %671 = vmatpush1.msra.mxu0 0.0
      %672 = vmatprep.subr.mxu0 0.0
      %673 = vmatpush1.msra.mxu0 0.0
      %674 = vmatprep.subr.mxu0 0.0
      %675 = vmatpush1.msra.mxu0 0.0
      %676 = vmatprep.subr.mxu0 0.0
      %677 = vmatpush1.msra.mxu0 0.0
      %678 = vmatprep.subr.mxu0 0.0
      %679 = vmatpush1.msra.mxu0 0.0
      %680 = vmatprep.subr.mxu0 0.0
      %681 = vmatpush1.msra.mxu0 0.0
      %682 = vmatprep.subr.mxu0 0.0
      %683 = vmatpush1.msra.mxu0 0.0
      %684 = vmatprep.subr.mxu0 0.0
      %685 = vmatpush1.msra.mxu0 0.0
      %686 = vmatprep.subr.mxu0 0.0
      %687 = vmatpush1.msra.mxu0 0.0
      %688 = vmatprep.subr.mxu0 0.0
      %689 = vmatpush1.msra.mxu0 0.0
      %690 = vmatprep.subr.mxu0 0.0
      %691 = vmatpush1.msra.mxu0 0.0
      %692 = vmatprep.subr.mxu0 0.0
      %693 = vmatpush1.msra.mxu0 0.0
      %694 = vmatprep.subr.mxu0 0.0
      %695 = vmatpush1.msra.mxu0 0.0
      %696 = vmatprep.mubr.f32.mxu0 0.0
      %697 = vmatmul.mubr.f32.gmra.mrb[0].mxu0 %v363
      %v698 = vpop.f32.mrb[0].mxu0
      %v699 = vadd.f32 %v629, %v698
      %v700 = vpop.f32.mrb[0].mxu0
      %701 = vdwg.mxu0
      %s702 = scalar_lea.vmem %s6, 1
      %v703 = vld [vmem:[%s702] sm:$0x1]
      %v705 = vlaneseq
      %v706 = vshrl.u32 %v705, 7
      %v707 = vsub.s32 0, %v706
      %v708 = vrot.slane %v703, %v707
      %v710 = vadd.f32 %v699, %v708
      %v711 = vxor.u32 %v710, 2147483648
      %v712 = vmul.f32 %v711, 1.442695
      %v713 = vpow.pop %v712
      %v714 = vadd.f32 %v713, 1.0
      %v715 = vrcp.pop %v714
      %v716 = vmul.f32 1.0, %v715
      %v717 = vtanh.pop %v710
      %v718 = vmul.f32 %v716, %v230
      %720 = vrot.lane.b32.xlu0 %v717, 64
      %v721 = vpop.permute.xlu0 %720
      %v723 = vmul.f32 %v716, %v721
      %725 = vrot.lane.b32.xlu0 %v723, 32
      %v726 = vpop.permute.xlu0 %725
      %v728 = vadd.f32 %v718, %v726
      %v729 = vtanh.pop %v728
      %731 = vrot.lane.b32.xlu0 %v729, 64
      %v732 = vpop.permute.xlu0 %731
      %v734 = vmul.f32 %v716, %v732
      %s735 = ssub.s32 %s218, 2
      %p736 = scmp.ge.s32.totalorder %s735, 0
      %p737 = scmp.lt.s32.totalorder %s735, 8
      %p738 = pnand %p736, %p737
      %p739 = pneg %p738
      %s740 = scalar_select %p739, 1, 0
      %v741 = vstv %s740
      %vm742 = vcmp.eq.s32.totalorder %v741, 1
      %v743 = vsel %vm742, %v734, %v225
      %v744 = vsel %vm742, %v728, %v230
      %s745 = scalar_lea.vmem [#allocation4], 64
      %v746 = vld [vmem:[%s745] sm:$0xff]
      %v747 = vld [vmem:[%s745 + $0x8] sm:$0xff]
      %v748 = vld [vmem:[%s745 + $0x10] sm:$0xff]
      %v749 = vld [vmem:[%s745 + $0x18] sm:$0xff]
      %s750 = scalar_lea.vmem [#allocation6], 64
      %v751 = vld [vmem:[%s750] sm:$0xff]
      %v752 = vld [vmem:[%s750 + $0x8] sm:$0xff]
      %v753 = vld [vmem:[%s750 + $0x10] sm:$0xff]
      %v754 = vld [vmem:[%s750 + $0x18] sm:$0xff]
      %756 = vrot.lane.b32.xlu0 %v226, 32
      %v757 = vpop.permute.xlu0 %756
      %v758 = vsel %vm245, %v757, 0
      %760 = vmatprep.subr.mxu0 0.0
      %761 = vmatpush1.msra.mxu0 %v751
      %762 = vmatprep.subr.mxu0 0.0
      %763 = vmatpush1.msra.mxu0 %v752
      %764 = vmatprep.subr.mxu0 0.0
      %765 = vmatpush1.msra.mxu0 %v753
      %766 = vmatprep.subr.mxu0 0.0
      %767 = vmatpush1.msra.mxu0 %v754
      %768 = vmatprep.subr.mxu0 0.0
      %769 = vmatpush1.msra.mxu0 0.0
      %770 = vmatprep.subr.mxu0 0.0
      %771 = vmatpush1.msra.mxu0 0.0
      %772 = vmatprep.subr.mxu0 0.0
      %773 = vmatpush1.msra.mxu0 0.0
      %774 = vmatprep.subr.mxu0 0.0
      %775 = vmatpush1.msra.mxu0 0.0
      %776 = vmatprep.subr.mxu0 0.0
      %777 = vmatpush1.msra.mxu0 0.0
      %778 = vmatprep.subr.mxu0 0.0
      %779 = vmatpush1.msra.mxu0 0.0
      %780 = vmatprep.subr.mxu0 0.0
      %781 = vmatpush1.msra.mxu0 0.0
      %782 = vmatprep.subr.mxu0 0.0
      %783 = vmatpush1.msra.mxu0 0.0
      %784 = vmatprep.subr.mxu0 0.0
      %785 = vmatpush1.msra.mxu0 0.0
      %786 = vmatprep.subr.mxu0 0.0
      %787 = vmatpush1.msra.mxu0 0.0
      %788 = vmatprep.subr.mxu0 0.0
      %789 = vmatpush1.msra.mxu0 0.0
      %790 = vmatprep.subr.mxu0 0.0
      %791 = vmatpush1.msra.mxu0 0.0
      %792 = vmatprep.subr.mxu0 0.0
      %793 = vmatpush1.msra.mxu0 0.0
      %794 = vmatprep.subr.mxu0 0.0
      %795 = vmatpush1.msra.mxu0 0.0
      %796 = vmatprep.subr.mxu0 0.0
      %797 = vmatpush1.msra.mxu0 0.0
      %798 = vmatprep.subr.mxu0 0.0
      %799 = vmatpush1.msra.mxu0 0.0
      %800 = vmatprep.subr.mxu0 0.0
      %801 = vmatpush1.msra.mxu0 0.0
      %802 = vmatprep.subr.mxu0 0.0
      %803 = vmatpush1.msra.mxu0 0.0
      %804 = vmatprep.subr.mxu0 0.0
      %805 = vmatpush1.msra.mxu0 0.0
      %806 = vmatprep.subr.mxu0 0.0
      %807 = vmatpush1.msra.mxu0 0.0
      %808 = vmatprep.subr.mxu0 0.0
      %809 = vmatpush1.msra.mxu0 0.0
      %810 = vmatprep.subr.mxu0 0.0
      %811 = vmatpush1.msra.mxu0 0.0
      %812 = vmatprep.subr.mxu0 0.0
      %813 = vmatpush1.msra.mxu0 0.0
      %814 = vmatprep.subr.mxu0 0.0
      %815 = vmatpush1.msra.mxu0 0.0
      %816 = vmatprep.subr.mxu0 0.0
      %817 = vmatpush1.msra.mxu0 0.0
      %818 = vmatprep.subr.mxu0 0.0
      %819 = vmatpush1.msra.mxu0 0.0
      %820 = vmatprep.subr.mxu0 0.0
      %821 = vmatpush1.msra.mxu0 0.0
      %822 = vmatprep.subr.mxu0 0.0
      %823 = vmatpush1.msra.mxu0 0.0
      %824 = vmatprep.mubr.f32.mxu0 0.0
      %825 = vmatmul.mubr.f32.gmra.mrb[0].mxu0 %v758
      %v826 = vpop.f32.mrb[0].mxu0
      %v827 = vadd.f32 0.0, %v826
      %v828 = vpop.f32.mrb[0].mxu0
      %829 = vdwg.mxu0
      %830 = vmatprep.subr.mxu0 0.0
      %831 = vmatpush1.msra.mxu0 %v746
      %832 = vmatprep.subr.mxu0 0.0
      %833 = vmatpush1.msra.mxu0 %v747
      %834 = vmatprep.subr.mxu0 0.0
      %835 = vmatpush1.msra.mxu0 %v748
      %836 = vmatprep.subr.mxu0 0.0
      %837 = vmatpush1.msra.mxu0 %v749
      %838 = vmatprep.subr.mxu0 0.0
      %839 = vmatpush1.msra.mxu0 0.0
      %840 = vmatprep.subr.mxu0 0.0
      %841 = vmatpush1.msra.mxu0 0.0
      %842 = vmatprep.subr.mxu0 0.0
      %843 = vmatpush1.msra.mxu0 0.0
      %844 = vmatprep.subr.mxu0 0.0
      %845 = vmatpush1.msra.mxu0 0.0
      %846 = vmatprep.subr.mxu0 0.0
      %847 = vmatpush1.msra.mxu0 0.0
      %848 = vmatprep.subr.mxu0 0.0
      %849 = vmatpush1.msra.mxu0 0.0
      %850 = vmatprep.subr.mxu0 0.0
      %851 = vmatpush1.msra.mxu0 0.0
      %852 = vmatprep.subr.mxu0 0.0
      %853 = vmatpush1.msra.mxu0 0.0
      %854 = vmatprep.subr.mxu0 0.0
      %855 = vmatpush1.msra.mxu0 0.0
      %856 = vmatprep.subr.mxu0 0.0
      %857 = vmatpush1.msra.mxu0 0.0
      %858 = vmatprep.subr.mxu0 0.0
      %859 = vmatpush1.msra.mxu0 0.0
      %860 = vmatprep.subr.mxu0 0.0
      %861 = vmatpush1.msra.mxu0 0.0
      %862 = vmatprep.subr.mxu0 0.0
      %863 = vmatpush1.msra.mxu0 0.0
      %864 = vmatprep.subr.mxu0 0.0
      %865 = vmatpush1.msra.mxu0 0.0
      %866 = vmatprep.subr.mxu0 0.0
      %867 = vmatpush1.msra.mxu0 0.0
      %868 = vmatprep.subr.mxu0 0.0
      %869 = vmatpush1.msra.mxu0 0.0
      %870 = vmatprep.subr.mxu0 0.0
      %871 = vmatpush1.msra.mxu0 0.0
      %872 = vmatprep.subr.mxu0 0.0
      %873 = vmatpush1.msra.mxu0 0.0
      %874 = vmatprep.subr.mxu0 0.0
      %875 = vmatpush1.msra.mxu0 0.0
      %876 = vmatprep.subr.mxu0 0.0
      %877 = vmatpush1.msra.mxu0 0.0
      %878 = vmatprep.subr.mxu0 0.0
      %879 = vmatpush1.msra.mxu0 0.0
      %880 = vmatprep.subr.mxu0 0.0
      %881 = vmatpush1.msra.mxu0 0.0
      %882 = vmatprep.subr.mxu0 0.0
      %883 = vmatpush1.msra.mxu0 0.0
      %884 = vmatprep.subr.mxu0 0.0
      %885 = vmatpush1.msra.mxu0 0.0
      %886 = vmatprep.subr.mxu0 0.0
      %887 = vmatpush1.msra.mxu0 0.0
      %888 = vmatprep.subr.mxu0 0.0
      %889 = vmatpush1.msra.mxu0 0.0
      %890 = vmatprep.subr.mxu0 0.0
      %891 = vmatpush1.msra.mxu0 0.0
      %892 = vmatprep.subr.mxu0 0.0
      %893 = vmatpush1.msra.mxu0 0.0
      %894 = vmatprep.mubr.f32.mxu0 0.0
      %895 = vmatmul.mubr.f32.gmra.mrb[0].mxu0 %v560
      %v896 = vpop.f32.mrb[0].mxu0
      %v897 = vadd.f32 %v827, %v896
      %v898 = vpop.f32.mrb[0].mxu0
      %899 = vdwg.mxu0
      %s900 = scalar_lea.vmem %s6, 2
      %v901 = vld [vmem:[%s900] sm:$0x1]
      %v903 = vlaneseq
      %v904 = vshrl.u32 %v903, 7
      %v905 = vsub.s32 0, %v904
      %v906 = vrot.slane %v901, %v905
      %v908 = vadd.f32 %v897, %v906
      %v909 = vxor.u32 %v908, 2147483648
      %v910 = vmul.f32 %v909, 1.442695
      %v911 = vpow.pop %v910
      %v912 = vadd.f32 %v911, 1.0
      %v913 = vrcp.pop %v912
      %v914 = vmul.f32 1.0, %v913
      %v915 = vtanh.pop %v908
      %v916 = vmul.f32 %v914, %v231
      %918 = vrot.lane.b32.xlu0 %v915, 64
      %v919 = vpop.permute.xlu0 %918
      %v921 = vmul.f32 %v914, %v919
      %923 = vrot.lane.b32.xlu0 %v921, 32
      %v924 = vpop.permute.xlu0 %923
      %v926 = vadd.f32 %v916, %v924
      %v927 = vtanh.pop %v926
      %929 = vrot.lane.b32.xlu0 %v927, 64
      %v930 = vpop.permute.xlu0 %929
      %v932 = vmul.f32 %v914, %v930
      %s933 = ssub.s32 %s218, 3
      %p934 = scmp.ge.s32.totalorder %s933, 0
      %p935 = scmp.lt.s32.totalorder %s933, 8
      %p936 = pnand %p934, %p935
      %p937 = pneg %p936
      %s938 = scalar_select %p937, 1, 0
      %v939 = vstv %s938
      %vm940 = vcmp.eq.s32.totalorder %v939, 1
      %v941 = vsel %vm940, %v932, %v226
      %v942 = vsel %vm940, %v926, %v231
      %s943 = scalar_lea.vmem [#allocation4], 96
      %v944 = vld [vmem:[%s943] sm:$0xff]
      %v945 = vld [vmem:[%s943 + $0x8] sm:$0xff]
      %v946 = vld [vmem:[%s943 + $0x10] sm:$0xff]
      %v947 = vld [vmem:[%s943 + $0x18] sm:$0xff]
      %s948 = scalar_lea.vmem [#allocation6], 96
      %v949 = vld [vmem:[%s948] sm:$0xff]
      %v950 = vld [vmem:[%s948 + $0x8] sm:$0xff]
      %v951 = vld [vmem:[%s948 + $0x10] sm:$0xff]
      %v952 = vld [vmem:[%s948 + $0x18] sm:$0xff]
      %954 = vrot.lane.b32.xlu0 %v227, 32
      %v955 = vpop.permute.xlu0 %954
      %v956 = vsel %vm245, %v955, 0
      %958 = vmatprep.subr.mxu0 0.0
      %959 = vmatpush1.msra.mxu0 %v949
      %960 = vmatprep.subr.mxu0 0.0
      %961 = vmatpush1.msra.mxu0 %v950
      %962 = vmatprep.subr.mxu0 0.0
      %963 = vmatpush1.msra.mxu0 %v951
      %964 = vmatprep.subr.mxu0 0.0
      %965 = vmatpush1.msra.mxu0 %v952
      %966 = vmatprep.subr.mxu0 0.0
      %967 = vmatpush1.msra.mxu0 0.0
      %968 = vmatprep.subr.mxu0 0.0
      %969 = vmatpush1.msra.mxu0 0.0
      %970 = vmatprep.subr.mxu0 0.0
      %971 = vmatpush1.msra.mxu0 0.0
      %972 = vmatprep.subr.mxu0 0.0
      %973 = vmatpush1.msra.mxu0 0.0
      %974 = vmatprep.subr.mxu0 0.0
      %975 = vmatpush1.msra.mxu0 0.0
      %976 = vmatprep.subr.mxu0 0.0
      %977 = vmatpush1.msra.mxu0 0.0
      %978 = vmatprep.subr.mxu0 0.0
      %979 = vmatpush1.msra.mxu0 0.0
      %980 = vmatprep.subr.mxu0 0.0
      %981 = vmatpush1.msra.mxu0 0.0
      %982 = vmatprep.subr.mxu0 0.0
      %983 = vmatpush1.msra.mxu0 0.0
      %984 = vmatprep.subr.mxu0 0.0
      %985 = vmatpush1.msra.mxu0 0.0
      %986 = vmatprep.subr.mxu0 0.0
      %987 = vmatpush1.msra.mxu0 0.0
      %988 = vmatprep.subr.mxu0 0.0
      %989 = vmatpush1.msra.mxu0 0.0
      %990 = vmatprep.subr.mxu0 0.0
      %991 = vmatpush1.msra.mxu0 0.0
      %992 = vmatprep.subr.mxu0 0.0
      %993 = vmatpush1.msra.mxu0 0.0
      %994 = vmatprep.subr.mxu0 0.0
      %995 = vmatpush1.msra.mxu0 0.0
      %996 = vmatprep.subr.mxu0 0.0
      %997 = vmatpush1.msra.mxu0 0.0
      %998 = vmatprep.subr.mxu0 0.0
      %999 = vmatpush1.msra.mxu0 0.0
      %1000 = vmatprep.subr.mxu0 0.0
      %1001 = vmatpush1.msra.mxu0 0.0
      %1002 = vmatprep.subr.mxu0 0.0
      %1003 = vmatpush1.msra.mxu0 0.0
      %1004 = vmatprep.subr.mxu0 0.0
      %1005 = vmatpush1.msra.mxu0 0.0
      %1006 = vmatprep.subr.mxu0 0.0
      %1007 = vmatpush1.msra.mxu0 0.0
      %1008 = vmatprep.subr.mxu0 0.0
      %1009 = vmatpush1.msra.mxu0 0.0
      %1010 = vmatprep.subr.mxu0 0.0
      %1011 = vmatpush1.msra.mxu0 0.0
      %1012 = vmatprep.subr.mxu0 0.0
      %1013 = vmatpush1.msra.mxu0 0.0
      %1014 = vmatprep.subr.mxu0 0.0
      %1015 = vmatpush1.msra.mxu0 0.0
      %1016 = vmatprep.subr.mxu0 0.0
      %1017 = vmatpush1.msra.mxu0 0.0
      %1018 = vmatprep.subr.mxu0 0.0
      %1019 = vmatpush1.msra.mxu0 0.0
      %1020 = vmatprep.subr.mxu0 0.0
      %1021 = vmatpush1.msra.mxu0 0.0
      %1022 = vmatprep.mubr.f32.mxu0 0.0
      %1023 = vmatmul.mubr.f32.gmra.mrb[0].mxu0 %v956
      %v1024 = vpop.f32.mrb[0].mxu0
      %v1025 = vadd.f32 0.0, %v1024
      %v1026 = vpop.f32.mrb[0].mxu0
      %1027 = vdwg.mxu0
      %1028 = vmatprep.subr.mxu0 0.0
      %1029 = vmatpush1.msra.mxu0 %v944
      %1030 = vmatprep.subr.mxu0 0.0
      %1031 = vmatpush1.msra.mxu0 %v945
      %1032 = vmatprep.subr.mxu0 0.0
      %1033 = vmatpush1.msra.mxu0 %v946
      %1034 = vmatprep.subr.mxu0 0.0
      %1035 = vmatpush1.msra.mxu0 %v947
      %1036 = vmatprep.subr.mxu0 0.0
      %1037 = vmatpush1.msra.mxu0 0.0
      %1038 = vmatprep.subr.mxu0 0.0
      %1039 = vmatpush1.msra.mxu0 0.0
      %1040 = vmatprep.subr.mxu0 0.0
      %1041 = vmatpush1.msra.mxu0 0.0
      %1042 = vmatprep.subr.mxu0 0.0
      %1043 = vmatpush1.msra.mxu0 0.0
      %1044 = vmatprep.subr.mxu0 0.0
      %1045 = vmatpush1.msra.mxu0 0.0
      %1046 = vmatprep.subr.mxu0 0.0
      %1047 = vmatpush1.msra.mxu0 0.0
      %1048 = vmatprep.subr.mxu0 0.0
      %1049 = vmatpush1.msra.mxu0 0.0
      %1050 = vmatprep.subr.mxu0 0.0
      %1051 = vmatpush1.msra.mxu0 0.0
      %1052 = vmatprep.subr.mxu0 0.0
      %1053 = vmatpush1.msra.mxu0 0.0
      %1054 = vmatprep.subr.mxu0 0.0
      %1055 = vmatpush1.msra.mxu0 0.0
      %1056 = vmatprep.subr.mxu0 0.0
      %1057 = vmatpush1.msra.mxu0 0.0
      %1058 = vmatprep.subr.mxu0 0.0
      %1059 = vmatpush1.msra.mxu0 0.0
      %1060 = vmatprep.subr.mxu0 0.0
      %1061 = vmatpush1.msra.mxu0 0.0
      %1062 = vmatprep.subr.mxu0 0.0
      %1063 = vmatpush1.msra.mxu0 0.0
      %1064 = vmatprep.subr.mxu0 0.0
      %1065 = vmatpush1.msra.mxu0 0.0
      %1066 = vmatprep.subr.mxu0 0.0
      %1067 = vmatpush1.msra.mxu0 0.0
      %1068 = vmatprep.subr.mxu0 0.0
      %1069 = vmatpush1.msra.mxu0 0.0
      %1070 = vmatprep.subr.mxu0 0.0
      %1071 = vmatpush1.msra.mxu0 0.0
      %1072 = vmatprep.subr.mxu0 0.0
      %1073 = vmatpush1.msra.mxu0 0.0
      %1074 = vmatprep.subr.mxu0 0.0
      %1075 = vmatpush1.msra.mxu0 0.0
      %1076 = vmatprep.subr.mxu0 0.0
      %1077 = vmatpush1.msra.mxu0 0.0
      %1078 = vmatprep.subr.mxu0 0.0
      %1079 = vmatpush1.msra.mxu0 0.0
      %1080 = vmatprep.subr.mxu0 0.0
      %1081 = vmatpush1.msra.mxu0 0.0
      %1082 = vmatprep.subr.mxu0 0.0
      %1083 = vmatpush1.msra.mxu0 0.0
      %1084 = vmatprep.subr.mxu0 0.0
      %1085 = vmatpush1.msra.mxu0 0.0
      %1086 = vmatprep.subr.mxu0 0.0
      %1087 = vmatpush1.msra.mxu0 0.0
      %1088 = vmatprep.subr.mxu0 0.0
      %1089 = vmatpush1.msra.mxu0 0.0
      %1090 = vmatprep.subr.mxu0 0.0
      %1091 = vmatpush1.msra.mxu0 0.0
      %1092 = vmatprep.mubr.f32.mxu0 0.0
      %1093 = vmatmul.mubr.f32.gmra.mrb[0].mxu0 %v758
      %v1094 = vpop.f32.mrb[0].mxu0
      %v1095 = vadd.f32 %v1025, %v1094
      %v1096 = vpop.f32.mrb[0].mxu0
      %1097 = vdwg.mxu0
      %s1098 = scalar_lea.vmem %s6, 3
      %v1099 = vld [vmem:[%s1098] sm:$0x1]
      %v1101 = vlaneseq
      %v1102 = vshrl.u32 %v1101, 7
      %v1103 = vsub.s32 0, %v1102
      %v1104 = vrot.slane %v1099, %v1103
      %v1106 = vadd.f32 %v1095, %v1104
      %v1107 = vxor.u32 %v1106, 2147483648
      %v1108 = vmul.f32 %v1107, 1.442695
      %v1109 = vpow.pop %v1108
      %v1110 = vadd.f32 %v1109, 1.0
      %v1111 = vrcp.pop %v1110
      %v1112 = vmul.f32 1.0, %v1111
      %v1113 = vtanh.pop %v1106
      %v1114 = vmul.f32 %v1112, %v232
      %1116 = vrot.lane.b32.xlu0 %v1113, 64
      %v1117 = vpop.permute.xlu0 %1116
      %v1119 = vmul.f32 %v1112, %v1117
      %1121 = vrot.lane.b32.xlu0 %v1119, 32
      %v1122 = vpop.permute.xlu0 %1121
      %v1124 = vadd.f32 %v1114, %v1122
      %v1125 = vtanh.pop %v1124
      %1127 = vrot.lane.b32.xlu0 %v1125, 64
      %v1128 = vpop.permute.xlu0 %1127
      %v1130 = vmul.f32 %v1112, %v1128
      %s1131 = ssub.s32 %s218, 4
      %p1132 = scmp.ge.s32.totalorder %s1131, 0
      %p1133 = scmp.lt.s32.totalorder %s1131, 8
      %p1134 = pnand %p1132, %p1133
      %p1135 = pneg %p1134
      %s1136 = scalar_select %p1135, 1, 0
      %v1137 = vstv %s1136
      %vm1138 = vcmp.eq.s32.totalorder %v1137, 1
      %v1139 = vsel %vm1138, %v1130, %v227
      %v1140 = vsel %vm1138, %v1124, %v232
    $region50: #{tpu_custom_call.1} parent=1 // loop_footer
      %s222 = sadd.s32 1, %s218
    $region51: #{tpu_custom_call.1} parent=1 // loop_footer_branch
      %217 = sbr.rel target = $region47
    $region52: #{tpu_custom_call.1} parent=1 // loop_exit
      _
    %v1141 = vld [vmem:[%s7] sm:$0x1]
    %v1143 = vlaneseq
    %v1144 = vshrl.u32 %v1143, 7
    %v1145 = vsub.s32 0, %v1144
    %v1146 = vrot.slane %v1141, %v1145
    %1147 = vrot.lane.b32.xlu0 %v1146, 96
    %v1148 = vpop.permute.xlu0 %1147
    %v1150 = vmul.f32 %v227, %v1148
    %1152 = vrot.lane.b32.xlu0 %v1150, 32
    %v1153 = vpop.permute.xlu0 %1152
    %vm1155 = vcmask 261120
    %v1156 = vsel %vm1155, %v1153, 0.0
    %1157 = vadd.xlane.f32.xlu0 %v1156
    %v1158 = vpop.xlane.xlu0 %1157
    %v1159 = vld [vmem:[#allocation3] sm:$0x1]
    %v1161 = vlaneseq
    %v1162 = vshrl.u32 %v1161, 7
    %v1163 = vsub.s32 0, %v1162
    %v1164 = vrot.slane %v1159, %v1163
    %v1166 = vadd.f32 %v1158, %v1164
    %vm1167 = vcmask 7168
    %1168 = vst.msk [vmem:[%s9] sm:$0xff] %vm1167, %v1166
    // Predicated region
    $region53: #{tpu_custom_call.1} parent=1 // pred_check
      _
    $region54: #{tpu_custom_call.1} parent=1 // pred_check_branch
      %1170 = sbr.rel (0) target = $region56
    $region55: #{tpu_custom_call.1} parent=1 // pred_region
      _
    $region56: #{tpu_custom_call.1} parent=1 // pred_fallthru
      _
    // Predicated region
    $region57: #{tpu_custom_call.1} parent=1 // pred_check
      _
    $region58: #{tpu_custom_call.1} parent=1 // pred_check_branch
      %1172 = sbr.rel (0) target = $region60
    $region59: #{tpu_custom_call.1} parent=1 // pred_region
      _
    $region60: #{tpu_custom_call.1} parent=1 // pred_fallthru
      _
    %1173 = vsyncpa [#allocation5], 1
    %1174 = vsyncpa [#allocation7], 1

</llo_original>
